<compile_context>
chip_gen: v7x
topology: tpu7x:2x2x1
jax: 0.10.0
libtpu: 0.0.40
codegen_flags: <defaults>
</compile_context>

<pallas_src>
import math
from functools import partial

import jax
import jax.numpy as jnp
from jax import lax
from jax.experimental import pallas as pl
from jax.experimental.pallas import tpu as pltpu


# ----------------------------------------------------------------------------- kernel 1
def _mtan_proj_kernel(tt_ref, tq_ref, val_ref, msk_ref,
                      wte_ref, bte_ref, wq_ref, bq_ref, wk_ref, bk_ref,
                      wih_ref, bih_ref, of_ref, ob_ref, *, num_heads, ek):
    # tt_ref : (1, L, 1)    observed time points of this batch element
    # tq_ref : (Lq, 1)      reference (query) time points, shared across batch
    # val_ref: (1, D, 1, L) values,  time-minor layout (lane axis = L)
    # msk_ref: (1, D, 1, L) observation mask
    # wte/bte: (1, E)       fused [linear | periodic] time-embedding weight / bias rows
    # wq/bq  : (E, E)/(1,E) attention query projection (weight already transposed)
    # wk/bk  : (E, E)/(1,E) attention key projection
    # wih_ref: (2, 3H, I)   GRU input->gate weights (fwd, bwd) in PyTorch layout
    # bih_ref: (2, 3H, 1)   GRU input->gate biases
    # of_ref/ob_ref: (1, 3H, Lq)  per-direction GRU input pre-activations (transposed)
    t_obs = tt_ref[0]          # (L, 1)
    t_qry = tq_ref[...]        # (Lq, 1)

    def time_embed(tcol):
        # column 0 -> Linear(1,1), columns 1..E-1 -> sin(Linear(1,E-1))
        lin = tcol * wte_ref[...] + bte_ref[...]                 # (n, E)
        col = lax.broadcasted_iota(jnp.int32, lin.shape, 1)
        return jnp.where(col == 0, lin, jnp.sin(lin))

    te_k = time_embed(t_obs)   # (L, E)
    te_q = time_embed(t_qry)   # (Lq, E)

    k = jnp.dot(te_k, wk_ref[...], preferred_element_type=jnp.float32) + bk_ref[...]
    q = jnp.dot(te_q, wq_ref[...], preferred_element_type=jnp.float32) + bq_ref[...]

    vals = val_ref[0]          # (D, 1, L)
    mask = msk_ref[0]          # (D, 1, L)

    head_outs = []
    for hd in range(num_heads):
        q_h = q[:, hd * ek:(hd + 1) * ek]                        # (Lq, ek)
        k_h = k[:, hd * ek:(hd + 1) * ek]                        # (L,  ek)
        scores = jnp.dot(q_h, k_h.T,
                         preferred_element_type=jnp.float32) * (1.0 / math.sqrt(ek))  # (Lq, L)
        # per-feature masked softmax over observed time points (multiTimeAttention.attention)
        s = jnp.where(mask == 0.0, -1e9, scores[None, :, :])     # (D, Lq, L)
        m = jnp.max(s, axis=-1, keepdims=True)
        e = jnp.exp(s - m)
        p = e / jnp.sum(e, axis=-1, keepdims=True)
        head_outs.append(jnp.sum(p * vals, axis=-1))             # (D, Lq)
    # row order (head, feature) == PyTorch's .view(batch, -1, h*dim)
    att_t = head_outs[0] if num_heads == 1 else jnp.concatenate(head_outs, axis=0)   # (I, Lq)

    # Fused GRU input projection (epilogue, once per batch tile): W_ih @ att + b_ih
    of_ref[0] = jnp.dot(wih_ref[0], att_t, preferred_element_type=jnp.float32) + bih_ref[0]
    ob_ref[0] = jnp.dot(wih_ref[1], att_t, preferred_element_type=jnp.float32) + bih_ref[1]


# ----------------------------------------------------------------------------- kernel 2
def _gru_step_kernel(xp_ref, whh_ref, bhh_ref, o_ref, h_ref, *, hidden):
    # grid = (direction, time).  xp_ref: (1, 1, B, 3H) input-gate pre-activations of the
    # time step this (d, t) grid point consumes; whh/bhh stay resident per direction.
    t = pl.program_id(1)

    @pl.when(t == 0)
    def _():
        h_ref[...] = jnp.zeros_like(h_ref)

    h = h_ref[...]                                   # (B, H) f32 running hidden state
    gx = xp_ref[0, 0]                                # (B, 3H)  (r | z | n gate order)
    gh = jnp.dot(h, whh_ref[0], preferred_element_type=jnp.float32) + bhh_ref[0]
    r = jax.nn.sigmoid(gx[:, :hidden] + gh[:, :hidden])
    z = jax.nn.sigmoid(gx[:, hidden:2 * hidden] + gh[:, hidden:2 * hidden])
    n = jnp.tanh(gx[:, 2 * hidden:] + r * gh[:, 2 * hidden:])
    h_new = (1.0 - z) * n + z * h
    h_ref[...] = h_new
    o_ref[0, 0] = h_new.astype(o_ref.dtype)


# ----------------------------------------------------------------------------- wrapper
def enc_mtan_gru_forward(x, time_steps, query_times, params, *,
                         input_dim, embed_time, num_heads, nhidden):
    B, L, _ = x.shape
    Lq = query_times.shape[0]
    D, E, Hn = input_dim, embed_time, nhidden
    in_dim = num_heads * D
    GH = 3 * Hn
    ek = E // num_heads
    f32 = jnp.float32

    # --- layout plumbing (cheap XLA ops; keeps every Pallas block "full" in its last
    #     two dims so the (8,128) tiling rule holds regardless of small B/L/D) ---
    tt3 = time_steps.astype(f32)[..., None]                                   # (B, L, 1)
    tq2 = query_times.astype(f32)[:, None]                                    # (Lq, 1)
    vals_t = jnp.transpose(x[:, :, :D], (0, 2, 1))[:, :, None, :].astype(f32)  # (B, D, 1, L)
    mask_t = jnp.transpose(x[:, :, D:], (0, 2, 1))[:, :, None, :].astype(f32)  # (B, D, 1, L)

    wte = jnp.concatenate([params["lin_w"].reshape(1, 1),
                           params["per_w"].reshape(1, E - 1)], axis=1).astype(f32)   # (1, E)
    bte = jnp.concatenate([params["lin_b"].reshape(1, 1),
                           params["per_b"].reshape(1, E - 1)], axis=1).astype(f32)   # (1, E)
    wq_t = params["wq"].T.astype(f32)
    bq = params["bq"].reshape(1, E).astype(f32)
    wk_t = params["wk"].T.astype(f32)
    bk = params["bk"].reshape(1, E).astype(f32)
    wih = jnp.stack([params["w_ih_f"], params["w_ih_b"]]).astype(f32)          # (2, 3H, I)
    bih = jnp.stack([params["b_ih_f"], params["b_ih_b"]]).reshape(2, GH, 1).astype(f32)
    whh_t = jnp.stack([params["w_hh_f"].T, params["w_hh_b"].T]).astype(f32)    # (2, H, 3H)
    bhh = jnp.stack([params["b_hh_f"], params["b_hh_b"]]).reshape(2, 1, GH).astype(f32)

    # -------- kernel 1: time embedding + mTAN attention + fused GRU input projection
    mtan = pl.pallas_call(
        partial(_mtan_proj_kernel, num_heads=num_heads, ek=ek),
        grid=(B,),
        in_specs=[
            pl.BlockSpec((1, L, 1), lambda b: (b, 0, 0)),         # observed times
            pl.BlockSpec((Lq, 1), lambda b: (0, 0)),              # query times (resident)
            pl.BlockSpec((1, D, 1, L), lambda b: (b, 0, 0, 0)),   # values
            pl.BlockSpec((1, D, 1, L), lambda b: (b, 0, 0, 0)),   # mask
            pl.BlockSpec((1, E), lambda b: (0, 0)),               # time-embed weight
            pl.BlockSpec((1, E), lambda b: (0, 0)),               # time-embed bias
            pl.BlockSpec((E, E), lambda b: (0, 0)),               # W_q^T (resident)
            pl.BlockSpec((1, E), lambda b: (0, 0)),
            pl.BlockSpec((E, E), lambda b: (0, 0)),               # W_k^T (resident)
            pl.BlockSpec((1, E), lambda b: (0, 0)),
            pl.BlockSpec((2, GH, in_dim), lambda b: (0, 0, 0)),   # W_ih (both dirs, resident)
            pl.BlockSpec((2, GH, 1), lambda b: (0, 0, 0)),
        ],
        out_specs=(
            pl.BlockSpec((1, GH, Lq), lambda b: (b, 0, 0)),
            pl.BlockSpec((1, GH, Lq), lambda b: (b, 0, 0)),
        ),
        out_shape=(
            jax.ShapeDtypeStruct((B, GH, Lq), f32),
            jax.ShapeDtypeStruct((B, GH, Lq), f32),
        ),
        compiler_params=pltpu.CompilerParams(
            dimension_semantics=("parallel",),          # batch shards across megacore TCs
            vmem_limit_bytes=32 * 1024 * 1024,
        ),
    )
    xpT_f, xpT_b = mtan(tt3, tq2, vals_t, mask_t, wte, bte,
                        wq_t, bq, wk_t, bk, wih, bih)

    # Time-major, batch-second-to-last layout so each (direction, t) step of the GRU
    # streams one full (B, 3H) tile.  (2, B, 3H, Lq) -> (2, Lq, B, 3H)
    xp = jnp.transpose(jnp.stack([xpT_f, xpT_b], axis=0), (0, 3, 1, 2))

    # -------- kernel 2: bidirectional GRU recurrence
    def io_index(d, t):
        # forward direction walks t = 0..Lq-1, backward walks Lq-1..0
        return (d, t + d * (Lq - 1 - 2 * t), 0, 0)

    gru = pl.pallas_call(
        partial(_gru_step_kernel, hidden=Hn),
        grid=(2, Lq),
        in_specs=[
            pl.BlockSpec((1, 1, B, GH), io_index),                # streamed input gates
            pl.BlockSpec((1, Hn, GH), lambda d, t: (d, 0, 0)),    # W_hh^T resident per dir
            pl.BlockSpec((1, 1, GH), lambda d, t: (d, 0, 0)),     # b_hh resident per dir
        ],
        out_specs=pl.BlockSpec((1, 1, B, Hn), io_index),
        out_shape=jax.ShapeDtypeStruct((2, Lq, B, Hn), f32),
        scratch_shapes=[pltpu.VMEM((B, Hn), f32)],                # running hidden state
        compiler_params=pltpu.CompilerParams(
            dimension_semantics=("parallel", "arbitrary"),        # dir parallel, time sequential
            vmem_limit_bytes=32 * 1024 * 1024,
        ),
        cost_estimate=pl.CostEstimate(
            flops=2 * 2 * Lq * B * Hn * GH + 10 * 2 * Lq * B * Hn,
            transcendentals=2 * Lq * B * GH,
            bytes_accessed=(xp.size + 2 * Lq * B * Hn + whh_t.size + bhh.size) * 4,
        ),
    )
    out = gru(xp, whh_t, bhh)                                     # (2, Lq, B, H)

    # PyTorch bidirectional GRU output layout: concat(fwd, bwd) along the feature dim.
    return jnp.transpose(out, (2, 1, 0, 3)).reshape(B, Lq, 2 * Hn)


# ----------------------------------------------------------------------------- reference
def reference_forward(x, time_steps, query_times, p, *, input_dim, embed_time,
                      num_heads, nhidden):
    D, E, h, Hn = input_dim, embed_time, num_heads, nhidden
    B, L, _ = x.shape
    Lq = query_times.shape[0]
    vals = x[:, :, :D]
    mask = x[:, :, D:]

    def lte(tt):
        tt = tt[..., None]
        out1 = tt * p["lin_w"][0, 0] + p["lin_b"][0]
        out2 = jnp.sin(tt * p["per_w"][:, 0] + p["per_b"])
        return jnp.concatenate([out1, out2], axis=-1)

    key = lte(time_steps)                      # (B, L, E)
    query = lte(query_times[None, :])          # (1, Lq, E)
    q = query @ p["wq"].T + p["bq"]
    k = key @ p["wk"].T + p["bk"]
    ek = E // h
    qh = q.reshape(1, Lq, h, ek).transpose(0, 2, 1, 3)
    kh = k.reshape(B, L, h, ek).transpose(0, 2, 1, 3)
    scores = jnp.einsum("xhqe,bhle->bhql", qh, kh) / math.sqrt(ek)       # (B, h, Lq, L)
    scores = jnp.broadcast_to(scores[..., None], (B, h, Lq, L, D))
    scores = jnp.where(mask[:, None, None, :, :] == 0, -1e9, scores)
    p_attn = jax.nn.softmax(scores, axis=-2)
    att = jnp.sum(p_attn * vals[:, None, None, :, :], axis=-2)           # (B, h, Lq, D)
    enc_in = att.transpose(0, 2, 1, 3).reshape(B, Lq, h * D)

    def gru_dir(w_ih, w_hh, b_ih, b_hh, reverse):
        hstate = jnp.zeros((B, Hn), jnp.float32)
        outs = [None] * Lq
        order = range(Lq - 1, -1, -1) if reverse else range(Lq)
        for t in order:
            gi = enc_in[:, t] @ w_ih.T + b_ih
            gh = hstate @ w_hh.T + b_hh
            r = jax.nn.sigmoid(gi[:, :Hn] + gh[:, :Hn])
            z = jax.nn.sigmoid(gi[:, Hn:2 * Hn] + gh[:, Hn:2 * Hn])
            n = jnp.tanh(gi[:, 2 * Hn:] + r * gh[:, 2 * Hn:])
            hstate = (1.0 - z) * n + z * hstate
            outs[t] = hstate
        return jnp.stack(outs, axis=1)

    out_f = gru_dir(p["w_ih_f"], p["w_hh_f"], p["b_ih_f"], p["b_hh_f"], False)
    out_b = gru_dir(p["w_ih_b"], p["w_hh_b"], p["b_ih_b"], p["b_hh_b"], True)
    return jnp.concatenate([out_f, out_b], axis=-1)


if __name__ == "__main__":
    # Small shapes consistent with the module: input_dim=4, embed_time=16, num_heads=1,
    # nhidden=32, batch=2, 8 observed time points, 16 reference (query) points.
    B, L, Lq = 2, 8, 16
    input_dim, embed_time, num_heads, nhidden = 4, 16, 1, 32
    D, E, Hn = input_dim, embed_time, nhidden
    in_dim = num_heads * D

    key = jax.random.PRNGKey(0)
    ks = jax.random.split(key, 19)

    vals = jax.random.normal(ks[0], (B, L, D), dtype=jnp.float32)
    obs_mask = (jax.random.uniform(ks[1], (B, L, D)) > 0.3).astype(jnp.float32)
    x = jnp.concatenate([vals * obs_mask, obs_mask], axis=-1)           # (B, L, 2D)
    time_steps = jnp.sort(jax.random.uniform(ks[2], (B, L)), axis=-1).astype(jnp.float32)
    query_times = jnp.linspace(0.0, 1.0, Lq, dtype=jnp.float32)         # self.query

    def u(k, shape, scale):
        return jax.random.uniform(k, shape, minval=-scale, maxval=scale, dtype=jnp.float32)

    se = 1.0 / math.sqrt(E)
    sh = 1.0 / math.sqrt(Hn)
    params = {
        "lin_w": u(ks[3], (1, 1), 1.0), "lin_b": u(ks[4], (1,), 1.0),
        "per_w": u(ks[5], (E - 1, 1), 1.0), "per_b": u(ks[6], (E - 1,), 1.0),
        "wq": u(ks[7], (E, E), se), "bq": u(ks[8], (E,), se),
        "wk": u(ks[9], (E, E), se), "bk": u(ks[10], (E,), se),
        "w_ih_f": u(ks[11], (3 * Hn, in_dim), sh), "w_hh_f": u(ks[12], (3 * Hn, Hn), sh),
        "b_ih_f": u(ks[13], (3 * Hn,), sh), "b_hh_f": u(ks[14], (3 * Hn,), sh),
        "w_ih_b": u(ks[15], (3 * Hn, in_dim), sh), "w_hh_b": u(ks[16], (3 * Hn, Hn), sh),
        "b_ih_b": u(ks[17], (3 * Hn,), sh), "b_hh_b": u(ks[18], (3 * Hn,), sh),
    }

    fwd = jax.jit(partial(enc_mtan_gru_forward, input_dim=input_dim, embed_time=embed_time,
                          num_heads=num_heads, nhidden=nhidden))
    out = jax.block_until_ready(fwd(x, time_steps, query_times, params))

    ref = reference_forward(x, time_steps, query_times, params,
                            input_dim=input_dim, embed_time=embed_time,
                            num_heads=num_heads, nhidden=nhidden)

    assert out.shape == (B, Lq, 2 * Hn), out.shape
    # Tolerance accommodates TPU default (bf16-pass) matmul precision differing slightly
    # between the in-kernel MXU dots and the XLA reference across the 16-step recurrence.
    assert jnp.allclose(out, ref, atol=2e-2, rtol=2e-2), float(jnp.max(jnp.abs(out - ref)))
    print("KERNEL_OK")
</pallas_src>

<mosaic_0001>
module attributes {stable_mosaic.version = 11 : i64} {
  func.func @_gru_step_kernel(%arg0: i32, %arg1: i32, %arg2: memref<1x1x2x96xf32, #tpu.memory_space<vmem>>, %arg3: memref<1x32x96xf32, #tpu.memory_space<vmem>>, %arg4: memref<1x1x96xf32, #tpu.memory_space<vmem>>, %arg5: memref<1x1x2x32xf32, #tpu.memory_space<vmem>>, %arg6: memref<2x32xf32, #tpu.memory_space<vmem>>) attributes {dimension_semantics = [#tpu.dimension_semantics<parallel>, #tpu.dimension_semantics<arbitrary>], iteration_bounds = array<i64: 2, 16>, scalar_prefetch = 0 : i64, scratch_operands = 1 : i64, tpu.core_type = #tpu.core_type<tc>, window_params = [{transform_indices = @transform_0, window_bounds = array<i64: 1, 1, 2, 96>}, {transform_indices = @transform_1, window_bounds = array<i64: 1, 32, 96>}, {transform_indices = @transform_2, window_bounds = array<i64: 1, 1, 96>}, {transform_indices = @transform_3, window_bounds = array<i64: 1, 1, 2, 32>}]} {
    %c0_i32 = arith.constant 0 : i32
    %0 = arith.cmpi eq, %arg1, %c0_i32 : i32
    %1 = arith.extui %0 : i1 to i32
    %c0_i32_0 = arith.constant 0 : i32
    %2 = arith.cmpi ne, %1, %c0_i32_0 : i32
    scf.if %2 {
      %cst_21 = arith.constant 0.000000e+00 : f32
      %43 = vector.broadcast %cst_21 : f32 to vector<2x32xf32>
      %c0_22 = arith.constant 0 : index
      %c0_23 = arith.constant 0 : index
      %44 = vector.load %arg6[%c0_22, %c0_23] : memref<2x32xf32, #tpu.memory_space<vmem>>, vector<2x32xf32>
      tpu.vector_store %arg6[%c0_22, %c0_23], %43 {strides = array<i32>} : memref<2x32xf32, #tpu.memory_space<vmem>>, vector<2x32xf32>,
    } else {
    }
    %c0 = arith.constant 0 : index
    %c0_1 = arith.constant 0 : index
    %3 = vector.load %arg6[%c0, %c0_1] : memref<2x32xf32, #tpu.memory_space<vmem>>, vector<2x32xf32>
    %c0_2 = arith.constant 0 : index
    %c0_3 = arith.constant 0 : index
    %c0_4 = arith.constant 0 : index
    %c0_5 = arith.constant 0 : index
    %4 = vector.load %arg2[%c0_2, %c0_3, %c0_4, %c0_5] : memref<1x1x2x96xf32, #tpu.memory_space<vmem>>, vector<1x1x2x96xf32>
    %5 = vector.shape_cast %4 : vector<1x1x2x96xf32> to vector<2x96xf32>
    %c0_6 = arith.constant 0 : index
    %c0_7 = arith.constant 0 : index
    %c0_8 = arith.constant 0 : index
    %6 = vector.load %arg3[%c0_6, %c0_7, %c0_8] : memref<1x32x96xf32, #tpu.memory_space<vmem>>, vector<1x32x96xf32>
    %7 = vector.shape_cast %6 : vector<1x32x96xf32> to vector<32x96xf32>
    %cst = arith.constant dense<0.000000e+00> : vector<2x96xf32>
    %8 = tpu.matmul %3, %7, %cst {dimension_numbers = #tpu.dot_dimension_numbers<[1], [0], [0], [1], [0, 0, 1, 1], [], []>} : vector<2x32xf32>, vector<32x96xf32>, vector<2x96xf32> -> vector<2x96xf32>
    %c0_9 = arith.constant 0 : index
    %c0_10 = arith.constant 0 : index
    %c0_11 = arith.constant 0 : index
    %9 = vector.load %arg4[%c0_9, %c0_10, %c0_11] : memref<1x1x96xf32, #tpu.memory_space<vmem>>, vector<1x1x96xf32>
    %10 = vector.shape_cast %9 : vector<1x1x96xf32> to vector<1x96xf32>
    %11 = vector.broadcast %10 : vector<1x96xf32> to vector<2x96xf32>
    %12 = arith.addf %8, %11 : vector<2x96xf32>
    %13 = vector.extract_strided_slice %5 {offsets = [0, 0], sizes = [2, 32], strides = [1, 1]} : vector<2x96xf32> to vector<2x32xf32>
    %14 = vector.extract_strided_slice %12 {offsets = [0, 0], sizes = [2, 32], strides = [1, 1]} : vector<2x96xf32> to vector<2x32xf32>
    %15 = arith.addf %13, %14 : vector<2x32xf32>
    %16 = arith.negf %15 : vector<2x32xf32>
    %17 = math.exp %16 : vector<2x32xf32>
    %cst_12 = arith.constant 1.000000e+00 : f32
    %18 = vector.broadcast %cst_12 : f32 to vector<2x32xf32>
    %19 = arith.addf %18, %17 : vector<2x32xf32>
    %20 = arith.divf %18, %19 : vector<2x32xf32>
    %21 = vector.extract_strided_slice %5 {offsets = [0, 32], sizes = [2, 32], strides = [1, 1]} : vector<2x96xf32> to vector<2x32xf32>
    %22 = vector.extract_strided_slice %12 {offsets = [0, 32], sizes = [2, 32], strides = [1, 1]} : vector<2x96xf32> to vector<2x32xf32>
    %23 = arith.addf %21, %22 : vector<2x32xf32>
    %24 = arith.negf %23 : vector<2x32xf32>
    %25 = math.exp %24 : vector<2x32xf32>
    %cst_13 = arith.constant 1.000000e+00 : f32
    %26 = vector.broadcast %cst_13 : f32 to vector<2x32xf32>
    %27 = arith.addf %26, %25 : vector<2x32xf32>
    %28 = arith.divf %26, %27 : vector<2x32xf32>
    %29 = vector.extract_strided_slice %5 {offsets = [0, 64], sizes = [2, 32], strides = [1, 1]} : vector<2x96xf32> to vector<2x32xf32>
    %30 = vector.extract_strided_slice %12 {offsets = [0, 64], sizes = [2, 32], strides = [1, 1]} : vector<2x96xf32> to vector<2x32xf32>
    %31 = arith.mulf %20, %30 : vector<2x32xf32>
    %32 = arith.addf %29, %31 : vector<2x32xf32>
    %33 = math.tanh %32 : vector<2x32xf32>
    %cst_14 = arith.constant 1.000000e+00 : f32
    %34 = vector.broadcast %cst_14 : f32 to vector<2x32xf32>
    %35 = arith.subf %34, %28 : vector<2x32xf32>
    %36 = arith.mulf %35, %33 : vector<2x32xf32>
    %37 = arith.mulf %28, %3 : vector<2x32xf32>
    %38 = arith.addf %36, %37 : vector<2x32xf32>
    %c0_15 = arith.constant 0 : index
    %c0_16 = arith.constant 0 : index
    %39 = vector.load %arg6[%c0_15, %c0_16] : memref<2x32xf32, #tpu.memory_space<vmem>>, vector<2x32xf32>
    tpu.vector_store %arg6[%c0_15, %c0_16], %38 {strides = array<i32>} : memref<2x32xf32, #tpu.memory_space<vmem>>, vector<2x32xf32>,
    %c0_17 = arith.constant 0 : index
    %c0_18 = arith.constant 0 : index
    %c0_19 = arith.constant 0 : index
    %c0_20 = arith.constant 0 : index
    %40 = vector.load %arg5[%c0_17, %c0_18, %c0_19, %c0_20] : memref<1x1x2x32xf32, #tpu.memory_space<vmem>>, vector<1x1x2x32xf32>
    %41 = vector.shape_cast %40 : vector<1x1x2x32xf32> to vector<2x32xf32>
    %42 = vector.shape_cast %38 : vector<2x32xf32> to vector<1x1x2x32xf32>
    tpu.vector_store %arg5[%c0_17, %c0_18, %c0_19, %c0_20], %42 {strides = array<i32>} : memref<1x1x2x32xf32, #tpu.memory_space<vmem>>, vector<1x1x2x32xf32>,
    return
  }
  func.func @transform_0(%arg0: i32, %arg1: i32) -> (i32, i32, i32, i32) {
    %c2_i32 = arith.constant 2 : i32
    %0 = arith.muli %c2_i32, %arg1 : i32
    %c15_i32 = arith.constant 15 : i32
    %1 = arith.subi %c15_i32, %0 : i32
    %2 = arith.muli %arg0, %1 : i32
    %3 = arith.addi %arg1, %2 : i32
    %c0_i32 = arith.constant 0 : i32
    %c0_i32_0 = arith.constant 0 : i32
    %c0_i32_1 = arith.constant 0 : i32
    return %arg0, %3, %c0_i32, %c0_i32_0 : i32, i32, i32, i32
  }
  func.func @transform_1(%arg0: i32, %arg1: i32) -> (i32, i32, i32) {
    %c0_i32 = arith.constant 0 : i32
    %c0_i32_0 = arith.constant 0 : i32
    %c0_i32_1 = arith.constant 0 : i32
    return %arg0, %c0_i32, %c0_i32_0 : i32, i32, i32
  }
  func.func @transform_2(%arg0: i32, %arg1: i32) -> (i32, i32, i32) {
    %c0_i32 = arith.constant 0 : i32
    %c0_i32_0 = arith.constant 0 : i32
    %c0_i32_1 = arith.constant 0 : i32
    return %arg0, %c0_i32, %c0_i32_0 : i32, i32, i32
  }
  func.func @transform_3(%arg0: i32, %arg1: i32) -> (i32, i32, i32, i32) {
    %c2_i32 = arith.constant 2 : i32
    %0 = arith.muli %c2_i32, %arg1 : i32
    %c15_i32 = arith.constant 15 : i32
    %1 = arith.subi %c15_i32, %0 : i32
    %2 = arith.muli %arg0, %1 : i32
    %3 = arith.addi %arg1, %2 : i32
    %c0_i32 = arith.constant 0 : i32
    %c0_i32_0 = arith.constant 0 : i32
    %c0_i32_1 = arith.constant 0 : i32
    return %arg0, %3, %c0_i32, %c0_i32_0 : i32, i32, i32, i32
  }
}

module attributes {stable_mosaic.version = 11 : i64} {
  func.func @_mtan_proj_kernel(%arg0: i32, %arg1: memref<1x8x1xf32, #tpu.memory_space<vmem>>, %arg2: memref<16x1xf32, #tpu.memory_space<vmem>>, %arg3: memref<1x4x1x8xf32, #tpu.memory_space<vmem>>, %arg4: memref<1x4x1x8xf32, #tpu.memory_space<vmem>>, %arg5: memref<1x16xf32, #tpu.memory_space<vmem>>, %arg6: memref<1x16xf32, #tpu.memory_space<vmem>>, %arg7: memref<16x16xf32, #tpu.memory_space<vmem>>, %arg8: memref<1x16xf32, #tpu.memory_space<vmem>>, %arg9: memref<16x16xf32, #tpu.memory_space<vmem>>, %arg10: memref<1x16xf32, #tpu.memory_space<vmem>>, %arg11: memref<2x96x4xf32, #tpu.memory_space<vmem>>, %arg12: memref<2x96x1xf32, #tpu.memory_space<vmem>>, %arg13: memref<1x96x16xf32, #tpu.memory_space<vmem>>, %arg14: memref<1x96x16xf32, #tpu.memory_space<vmem>>) attributes {dimension_semantics = [#tpu.dimension_semantics<parallel>], iteration_bounds = array<i64: 2>, scalar_prefetch = 0 : i64, scratch_operands = 0 : i64, tpu.core_type = #tpu.core_type<tc>, window_params = [{transform_indices = @transform_0, window_bounds = array<i64: 1, 8, 1>}, {pipeline_mode = #tpu.pipeline_mode<synchronous>, transform_indices = @transform_1, window_bounds = array<i64: 16, 1>}, {transform_indices = @transform_2, window_bounds = array<i64: 1, 4, 1, 8>}, {transform_indices = @transform_3, window_bounds = array<i64: 1, 4, 1, 8>}, {pipeline_mode = #tpu.pipeline_mode<synchronous>, transform_indices = @transform_4, window_bounds = array<i64: 1, 16>}, {pipeline_mode = #tpu.pipeline_mode<synchronous>, transform_indices = @transform_5, window_bounds = array<i64: 1, 16>}, {pipeline_mode = #tpu.pipeline_mode<synchronous>, transform_indices = @transform_6, window_bounds = array<i64: 16, 16>}, {pipeline_mode = #tpu.pipeline_mode<synchronous>, transform_indices = @transform_7, window_bounds = array<i64: 1, 16>}, {pipeline_mode = #tpu.pipeline_mode<synchronous>, transform_indices = @transform_8, window_bounds = array<i64: 16, 16>}, {pipeline_mode = #tpu.pipeline_mode<synchronous>, transform_indices = @transform_9, window_bounds = array<i64: 1, 16>}, {pipeline_mode = #tpu.pipeline_mode<synchronous>, transform_indices = @transform_10, window_bounds = array<i64: 2, 96, 4>}, {pipeline_mode = #tpu.pipeline_mode<synchronous>, transform_indices = @transform_11, window_bounds = array<i64: 2, 96, 1>}, {transform_indices = @transform_12, window_bounds = array<i64: 1, 96, 16>}, {transform_indices = @transform_13, window_bounds = array<i64: 1, 96, 16>}]} {
    %c0 = arith.constant 0 : index
    %c0_0 = arith.constant 0 : index
    %c0_1 = arith.constant 0 : index
    %0 = vector.load %arg1[%c0, %c0_0, %c0_1] : memref<1x8x1xf32, #tpu.memory_space<vmem>>, vector<1x8x1xf32>
    %1 = vector.shape_cast %0 : vector<1x8x1xf32> to vector<8x1xf32>
    %c0_2 = arith.constant 0 : index
    %c0_3 = arith.constant 0 : index
    %2 = vector.load %arg2[%c0_2, %c0_3] : memref<16x1xf32, #tpu.memory_space<vmem>>, vector<16x1xf32>
    %c0_4 = arith.constant 0 : index
    %c0_5 = arith.constant 0 : index
    %3 = vector.load %arg5[%c0_4, %c0_5] : memref<1x16xf32, #tpu.memory_space<vmem>>, vector<1x16xf32>
    %4 = vector.broadcast %1 : vector<8x1xf32> to vector<8x16xf32>
    %5 = vector.broadcast %3 : vector<1x16xf32> to vector<8x16xf32>
    %6 = arith.mulf %4, %5 : vector<8x16xf32>
    %c0_6 = arith.constant 0 : index
    %c0_7 = arith.constant 0 : index
    %7 = vector.load %arg6[%c0_6, %c0_7] : memref<1x16xf32, #tpu.memory_space<vmem>>, vector<1x16xf32>
    %8 = vector.broadcast %7 : vector<1x16xf32> to vector<8x16xf32>
    %9 = arith.addf %6, %8 : vector<8x16xf32>
    %10 = tpu.iota {dimensions = array<i32: 1>} : vector<8x16xi32>
    %c0_i32 = arith.constant 0 : i32
    %11 = vector.broadcast %c0_i32 : i32 to vector<8x16xi32>
    %12 = arith.cmpi eq, %10, %11 : vector<8x16xi32>
    %13 = math.sin %9 : vector<8x16xf32>
    %14 = arith.select %12, %9, %13 : vector<8x16xi1>, vector<8x16xf32>
    %c0_8 = arith.constant 0 : index
    %c0_9 = arith.constant 0 : index
    %15 = vector.load %arg5[%c0_8, %c0_9] : memref<1x16xf32, #tpu.memory_space<vmem>>, vector<1x16xf32>
    %16 = vector.broadcast %2 : vector<16x1xf32> to vector<16x16xf32>
    %17 = vector.broadcast %15 : vector<1x16xf32> to vector<16x16xf32>
    %18 = arith.mulf %16, %17 : vector<16x16xf32>
    %c0_10 = arith.constant 0 : index
    %c0_11 = arith.constant 0 : index
    %19 = vector.load %arg6[%c0_10, %c0_11] : memref<1x16xf32, #tpu.memory_space<vmem>>, vector<1x16xf32>
    %20 = vector.broadcast %19 : vector<1x16xf32> to vector<16x16xf32>
    %21 = arith.addf %18, %20 : vector<16x16xf32>
    %22 = tpu.iota {dimensions = array<i32: 1>} : vector<16x16xi32>
    %c0_i32_12 = arith.constant 0 : i32
    %23 = vector.broadcast %c0_i32_12 : i32 to vector<16x16xi32>
    %24 = arith.cmpi eq, %22, %23 : vector<16x16xi32>
    %25 = math.sin %21 : vector<16x16xf32>
    %26 = arith.select %24, %21, %25 : vector<16x16xi1>, vector<16x16xf32>
    %c0_13 = arith.constant 0 : index
    %c0_14 = arith.constant 0 : index
    %27 = vector.load %arg9[%c0_13, %c0_14] : memref<16x16xf32, #tpu.memory_space<vmem>>, vector<16x16xf32>
    %cst = arith.constant dense<0.000000e+00> : vector<8x16xf32>
    %28 = tpu.matmul %14, %27, %cst {dimension_numbers = #tpu.dot_dimension_numbers<[1], [0], [0], [1], [0, 0, 1, 1], [], []>} : vector<8x16xf32>, vector<16x16xf32>, vector<8x16xf32> -> vector<8x16xf32>
    %c0_15 = arith.constant 0 : index
    %c0_16 = arith.constant 0 : index
    %29 = vector.load %arg10[%c0_15, %c0_16] : memref<1x16xf32, #tpu.memory_space<vmem>>, vector<1x16xf32>
    %30 = vector.broadcast %29 : vector<1x16xf32> to vector<8x16xf32>
    %31 = arith.addf %28, %30 : vector<8x16xf32>
    %c0_17 = arith.constant 0 : index
    %c0_18 = arith.constant 0 : index
    %32 = vector.load %arg7[%c0_17, %c0_18] : memref<16x16xf32, #tpu.memory_space<vmem>>, vector<16x16xf32>
    %cst_19 = arith.constant dense<0.000000e+00> : vector<16x16xf32>
    %33 = tpu.matmul %26, %32, %cst_19 {dimension_numbers = #tpu.dot_dimension_numbers<[1], [0], [0], [1], [0, 0, 1, 1], [], []>} : vector<16x16xf32>, vector<16x16xf32>, vector<16x16xf32> -> vector<16x16xf32>
    %c0_20 = arith.constant 0 : index
    %c0_21 = arith.constant 0 : index
    %34 = vector.load %arg8[%c0_20, %c0_21] : memref<1x16xf32, #tpu.memory_space<vmem>>, vector<1x16xf32>
    %35 = vector.broadcast %34 : vector<1x16xf32> to vector<16x16xf32>
    %36 = arith.addf %33, %35 : vector<16x16xf32>
    %c0_22 = arith.constant 0 : index
    %c0_23 = arith.constant 0 : index
    %c0_24 = arith.constant 0 : index
    %c0_25 = arith.constant 0 : index
    %37 = vector.load %arg3[%c0_22, %c0_23, %c0_24, %c0_25] : memref<1x4x1x8xf32, #tpu.memory_space<vmem>>, vector<1x4x1x8xf32>
    %38 = vector.shape_cast %37 : vector<1x4x1x8xf32> to vector<4x1x8xf32>
    %c0_26 = arith.constant 0 : index
    %c0_27 = arith.constant 0 : index
    %c0_28 = arith.constant 0 : index
    %c0_29 = arith.constant 0 : index
    %39 = vector.load %arg4[%c0_26, %c0_27, %c0_28, %c0_29] : memref<1x4x1x8xf32, #tpu.memory_space<vmem>>, vector<1x4x1x8xf32>
    %40 = vector.shape_cast %39 : vector<1x4x1x8xf32> to vector<4x1x8xf32>
    %41 = tpu.transpose %31, [1, 0] : vector<8x16xf32> -> vector<16x8xf32>
    %cst_30 = arith.constant dense<0.000000e+00> : vector<16x8xf32>
    %42 = tpu.matmul %36, %41, %cst_30 {dimension_numbers = #tpu.dot_dimension_numbers<[1], [0], [0], [1], [0, 0, 1, 1], [], []>} : vector<16x16xf32>, vector<16x8xf32>, vector<16x8xf32> -> vector<16x8xf32>
    %cst_31 = arith.constant 2.500000e-01 : f32
    %43 = vector.broadcast %cst_31 : f32 to vector<16x8xf32>
    %44 = arith.mulf %42, %43 : vector<16x8xf32>
    %cst_32 = arith.constant 0.000000e+00 : f32
    %45 = vector.broadcast %cst_32 : f32 to vector<4x1x8xf32>
    %46 = arith.cmpf oeq, %40, %45 : vector<4x1x8xf32>
    %47 = vector.shape_cast %44 : vector<16x8xf32> to vector<1x16x8xf32>
    %cst_33 = arith.constant -1.000000e+09 : f32
    %48 = vector.shape_cast %46 : vector<4x1x8xi1> to vector<4x1x8xi1>
    %49 = vector.broadcast %48 : vector<4x1x8xi1> to vector<4x16x8xi1>
    %50 = vector.broadcast %cst_33 : f32 to vector<4x16x8xf32>
    %51 = vector.shape_cast %47 : vector<1x16x8xf32> to vector<1x16x8xf32>
    %52 = vector.broadcast %51 : vector<1x16x8xf32> to vector<4x16x8xf32>
    %53 = arith.select %49, %50, %52 : vector<4x16x8xi1>, vector<4x16x8xf32>
    %cst_34 = arith.constant dense<0xFF800000> : vector<4x16xf32>
    %54 = vector.multi_reduction <maximumf>, %53, %cst_34 [2] : vector<4x16x8xf32> to vector<4x16xf32>
    %55 = vector.shape_cast %54 : vector<4x16xf32> to vector<4x16x1xf32>
    %56 = vector.broadcast %55 : vector<4x16x1xf32> to vector<4x16x8xf32>
    %57 = arith.subf %53, %56 : vector<4x16x8xf32>
    %58 = math.exp %57 : vector<4x16x8xf32>
    %cst_35 = arith.constant dense<0.000000e+00> : vector<4x16xf32>
    %59 = vector.multi_reduction <add>, %58, %cst_35 [2] : vector<4x16x8xf32> to vector<4x16xf32>
    %60 = vector.shape_cast %59 : vector<4x16xf32> to vector<4x16x1xf32>
    %61 = vector.broadcast %60 : vector<4x16x1xf32> to vector<4x16x8xf32>
    %62 = arith.divf %58, %61 : vector<4x16x8xf32>
    %63 = vector.broadcast %38 : vector<4x1x8xf32> to vector<4x16x8xf32>
    %64 = arith.mulf %62, %63 : vector<4x16x8xf32>
    %cst_36 = arith.constant dense<0.000000e+00> : vector<4x16xf32>
    %65 = vector.multi_reduction <add>, %64, %cst_36 [2] : vector<4x16x8xf32> to vector<4x16xf32>
    %c0_37 = arith.constant 0 : index
    %c0_38 = arith.constant 0 : index
    %c0_39 = arith.constant 0 : index
    %66 = vector.load %arg11[%c0_37, %c0_38, %c0_39] : memref<2x96x4xf32, #tpu.memory_space<vmem>>, vector<1x96x4xf32>
    %67 = vector.shape_cast %66 : vector<1x96x4xf32> to vector<96x4xf32>
    %cst_40 = arith.constant dense<0.000000e+00> : vector<96x16xf32>
    %68 = tpu.matmul %67, %65, %cst_40 {dimension_numbers = #tpu.dot_dimension_numbers<[1], [0], [0], [1], [0, 0, 1, 1], [], []>} : vector<96x4xf32>, vector<4x16xf32>, vector<96x16xf32> -> vector<96x16xf32>
    %c0_41 = arith.constant 0 : index
    %c0_42 = arith.constant 0 : index
    %c0_43 = arith.constant 0 : index
    %69 = vector.load %arg12[%c0_41, %c0_42, %c0_43] : memref<2x96x1xf32, #tpu.memory_space<vmem>>, vector<1x96x1xf32>
    %70 = vector.shape_cast %69 : vector<1x96x1xf32> to vector<96x1xf32>
    %71 = vector.broadcast %70 : vector<96x1xf32> to vector<96x16xf32>
    %72 = arith.addf %68, %71 : vector<96x16xf32>
    %c0_44 = arith.constant 0 : index
    %c0_45 = arith.constant 0 : index
    %c0_46 = arith.constant 0 : index
    %73 = vector.load %arg13[%c0_44, %c0_45, %c0_46] : memref<1x96x16xf32, #tpu.memory_space<vmem>>, vector<1x96x16xf32>
    %74 = vector.shape_cast %73 : vector<1x96x16xf32> to vector<96x16xf32>
    %75 = vector.shape_cast %72 : vector<96x16xf32> to vector<1x96x16xf32>
    tpu.vector_store %arg13[%c0_44, %c0_45, %c0_46], %75 {strides = array<i32>} : memref<1x96x16xf32, #tpu.memory_space<vmem>>, vector<1x96x16xf32>,
    %c1 = arith.constant 1 : index
    %c0_47 = arith.constant 0 : index
    %c0_48 = arith.constant 0 : index
    %76 = vector.load %arg11[%c1, %c0_47, %c0_48] : memref<2x96x4xf32, #tpu.memory_space<vmem>>, vector<1x96x4xf32>
    %77 = vector.shape_cast %76 : vector<1x96x4xf32> to vector<96x4xf32>
    %cst_49 = arith.constant dense<0.000000e+00> : vector<96x16xf32>
    %78 = tpu.matmul %77, %65, %cst_49 {dimension_numbers = #tpu.dot_dimension_numbers<[1], [0], [0], [1], [0, 0, 1, 1], [], []>} : vector<96x4xf32>, vector<4x16xf32>, vector<96x16xf32> -> vector<96x16xf32>
    %c1_50 = arith.constant 1 : index
    %c0_51 = arith.constant 0 : index
    %c0_52 = arith.constant 0 : index
    %79 = vector.load %arg12[%c1_50, %c0_51, %c0_52] : memref<2x96x1xf32, #tpu.memory_space<vmem>>, vector<1x96x1xf32>
    %80 = vector.shape_cast %79 : vector<1x96x1xf32> to vector<96x1xf32>
    %81 = vector.broadcast %80 : vector<96x1xf32> to vector<96x16xf32>
    %82 = arith.addf %78, %81 : vector<96x16xf32>
    %c0_53 = arith.constant 0 : index
    %c0_54 = arith.constant 0 : index
    %c0_55 = arith.constant 0 : index
    %83 = vector.load %arg14[%c0_53, %c0_54, %c0_55] : memref<1x96x16xf32, #tpu.memory_space<vmem>>, vector<1x96x16xf32>
    %84 = vector.shape_cast %83 : vector<1x96x16xf32> to vector<96x16xf32>
    %85 = vector.shape_cast %82 : vector<96x16xf32> to vector<1x96x16xf32>
    tpu.vector_store %arg14[%c0_53, %c0_54, %c0_55], %85 {strides = array<i32>} : memref<1x96x16xf32, #tpu.memory_space<vmem>>, vector<1x96x16xf32>,
    return
  }
  func.func @transform_0(%arg0: i32) -> (i32, i32, i32) {
    %c0_i32 = arith.constant 0 : i32
    %c0_i32_0 = arith.constant 0 : i32
    %c0_i32_1 = arith.constant 0 : i32
    return %arg0, %c0_i32, %c0_i32_0 : i32, i32, i32
  }
  func.func @transform_1(%arg0: i32) -> (i32, i32) {
    %c0_i32 = arith.constant 0 : i32
    %c0_i32_0 = arith.constant 0 : i32
    %c0_i32_1 = arith.constant 0 : i32
    return %c0_i32, %c0_i32_0 : i32, i32
  }
  func.func @transform_2(%arg0: i32) -> (i32, i32, i32, i32) {
    %c0_i32 = arith.constant 0 : i32
    %c0_i32_0 = arith.constant 0 : i32
    %c0_i32_1 = arith.constant 0 : i32
    %c0_i32_2 = arith.constant 0 : i32
    return %arg0, %c0_i32, %c0_i32_0, %c0_i32_1 : i32, i32, i32, i32
  }
  func.func @transform_3(%arg0: i32) -> (i32, i32, i32, i32) {
    %c0_i32 = arith.constant 0 : i32
    %c0_i32_0 = arith.constant 0 : i32
    %c0_i32_1 = arith.constant 0 : i32
    %c0_i32_2 = arith.constant 0 : i32
    return %arg0, %c0_i32, %c0_i32_0, %c0_i32_1 : i32, i32, i32, i32
  }
  func.func @transform_4(%arg0: i32) -> (i32, i32) {
    %c0_i32 = arith.constant 0 : i32
    %c0_i32_0 = arith.constant 0 : i32
    %c0_i32_1 = arith.constant 0 : i32
    return %c0_i32, %c0_i32_0 : i32, i32
  }
  func.func @transform_5(%arg0: i32) -> (i32, i32) {
    %c0_i32 = arith.constant 0 : i32
    %c0_i32_0 = arith.constant 0 : i32
    %c0_i32_1 = arith.constant 0 : i32
    return %c0_i32, %c0_i32_0 : i32, i32
  }
  func.func @transform_6(%arg0: i32) -> (i32, i32) {
    %c0_i32 = arith.constant 0 : i32
    %c0_i32_0 = arith.constant 0 : i32
    %c0_i32_1 = arith.constant 0 : i32
    return %c0_i32, %c0_i32_0 : i32, i32
  }
  func.func @transform_7(%arg0: i32) -> (i32, i32) {
    %c0_i32 = arith.constant 0 : i32
    %c0_i32_0 = arith.constant 0 : i32
    %c0_i32_1 = arith.constant 0 : i32
    return %c0_i32, %c0_i32_0 : i32, i32
  }
  func.func @transform_8(%arg0: i32) -> (i32, i32) {
    %c0_i32 = arith.constant 0 : i32
    %c0_i32_0 = arith.constant 0 : i32
    %c0_i32_1 = arith.constant 0 : i32
    return %c0_i32, %c0_i32_0 : i32, i32
  }
  func.func @transform_9(%arg0: i32) -> (i32, i32) {
    %c0_i32 = arith.constant 0 : i32
    %c0_i32_0 = arith.constant 0 : i32
    %c0_i32_1 = arith.constant 0 : i32
    return %c0_i32, %c0_i32_0 : i32, i32
  }
  func.func @transform_10(%arg0: i32) -> (i32, i32, i32) {
    %c0_i32 = arith.constant 0 : i32
    %c0_i32_0 = arith.constant 0 : i32
    %c0_i32_1 = arith.constant 0 : i32
    %c0_i32_2 = arith.constant 0 : i32
    return %c0_i32, %c0_i32_0, %c0_i32_1 : i32, i32, i32
  }
  func.func @transform_11(%arg0: i32) -> (i32, i32, i32) {
    %c0_i32 = arith.constant 0 : i32
    %c0_i32_0 = arith.constant 0 : i32
    %c0_i32_1 = arith.constant 0 : i32
    %c0_i32_2 = arith.constant 0 : i32
    return %c0_i32, %c0_i32_0, %c0_i32_1 : i32, i32, i32
  }
  func.func @transform_12(%arg0: i32) -> (i32, i32, i32) {
    %c0_i32 = arith.constant 0 : i32
    %c0_i32_0 = arith.constant 0 : i32
    %c0_i32_1 = arith.constant 0 : i32
    return %arg0, %c0_i32, %c0_i32_0 : i32, i32, i32
  }
  func.func @transform_13(%arg0: i32) -> (i32, i32, i32) {
    %c0_i32 = arith.constant 0 : i32
    %c0_i32_0 = arith.constant 0 : i32
    %c0_i32_1 = arith.constant 0 : i32
    return %arg0, %c0_i32, %c0_i32_0 : i32, i32, i32
  }
}

</mosaic_0001>

<llo_original>
// kernel: enc_mtan_gru_forward.3
$region0: #{enc_mtan_gru_forward.3}
  #allocation0 [shape = 'u32[]', space=smem, size = 0x4, offset = 0x4, fixed_abs, tag = 'smem constant byte address 0x4 - core index']
  #allocation1 [shape = 'u32[144,128]{1,0:T(1,128)}', space=vmem, size = 0x12000, scoped, tag = 'internal scratch']
  #allocation2 [shape = 'f32[2,32]{1,0:T(2,128)}', space=vmem, size = 0x400, scoped, tag = 'scratch operand']
  %s0 = inlined_call_operand.vmem [shape: f32[2,16,2,96], index: 0, kind: input, shape index: {}]
  %s1 = inlined_call_operand.vmem [shape: f32[2,32,96], index: 1, kind: input, shape index: {}]
  %s2 = inlined_call_operand.vmem [shape: f32[2,1,96], index: 2, kind: input, shape index: {}]
  %s3 = inlined_call_operand.vmem [shape: f32[2,16,2,32], index: 3, kind: output, shape index: {}]
  %s4 = sld [smem:[#allocation0]]
  $region49: #{enc_mtan_gru_forward.3} parent=0
    _
  %s6 = ssub.s32 1, %s4
  %s7 = scalar_select 0, %s6, %s4
  loop: start=0, step=1, limit=34
  $region2: #{enc_mtan_gru_forward.3} parent=0 // loop_pre_header
    _
  $region3: #{enc_mtan_gru_forward.3} parent=0 // loop_header
    %s9 = sphi 0, %s13
    %p10 = scmp.ge.s32.totalorder %s9, 34
    %s16 = sphi 0, %s28
    %s17 = sphi 0, %s24
    %s18 = sphi 0, %s16
    %s19 = sphi 0, %s17
    %s20 = sphi 0, %s18
    %s21 = sphi 0, %s19
    %s41 = sphi 0, %s43
    %s44 = sphi 0, %s41
    %s45 = sphi 0, %s44
    %s61 = sphi 0, %s45
    %s67 = sphi 0, %s69
    %s70 = sphi 0, %s67
    %s71 = sphi 0, %s70
    %s87 = sphi 0, %s71
    %s93 = sphi 0, %s95
    %s96 = sphi 0, %s93
    %s97 = sphi 0, %s96
    %s113 = sphi 0, %s97
    %s129 = sphi 0, %s131
    %s132 = sphi 0, %s129
    %s133 = sphi 0, %s132
    %s149 = sphi 0, %s133
  $region4: #{enc_mtan_gru_forward.3} parent=0 // loop_header_branch
    %12 = sbr.rel (%p10) target = $region8
  $region5: #{enc_mtan_gru_forward.3} parent=0 // loop_body
    %s14 = ssub.s32 %s9, 1
    %s15 = ssub.s32 %s9, 2
    %s22 = sadd.s32 1, %s17
    %p23 = scmp.ge.s32.totalorder %s22, 16
    %s24 = scalar_select %p23, 0, %s22
    %s25 = sadd.s32 1, %s16
    %s26 = scalar_select %p23, %s25, %s16
    %p27 = scmp.ge.s32.totalorder %s26, 2
    %s28 = scalar_select %p27, 0, %s26
    %s29 = smul.u32 %s17, 2
    %s30 = ssub.s32 15, %s29
    %s31 = smul.u32 %s16, %s30
    %s32 = sadd.s32 %s17, %s31
    %s33 = smul.u32 %s24, 2
    %s34 = ssub.s32 15, %s33
    %s35 = smul.u32 %s28, %s34
    %s36 = sadd.s32 %s24, %s35
    %s37 = ssub.s32 %s16, %s28
    %s38 = ssub.s32 %s32, %s36
    %s39 = sor.u32 %s37, %s38
    %p40 = scmp.eq.s32.totalorder %s39, 0
    %s42 = sadd.s32 %s41, 1
    %s43 = scalar_select %p40, %s41, %s42
    %p46 = pneg %p40
    %p47 = scmp.eq.s32.totalorder %s9, 31
    %p48 = por %p46, %p47
    %p49 = scmp.ne.s32.totalorder %s41, %s44
    %p50 = scmp.eq.s32.totalorder %s9, 0
    %p51 = por %p49, %p50
    %p52 = scmp.ne.s32.totalorder %s41, %s44
    %p53 = scmp.eq.s32.totalorder %s14, 31
    %p54 = por %p52, %p53
    %p55 = scmp.ne.s32.totalorder %s44, %s45
    %p56 = scmp.eq.s32.totalorder %s14, 0
    %p57 = por %p55, %p56
    %p58 = scmp.ne.s32.totalorder %s44, %s45
    %p59 = scmp.eq.s32.totalorder %s15, 31
    %p60 = por %p58, %p59
    %p62 = scmp.ne.s32.totalorder %s45, %s61
    %p63 = scmp.eq.s32.totalorder %s15, 0
    %p64 = por %p62, %p63
    %s65 = ssub.s32 %s16, %s28
    %p66 = scmp.eq.s32.totalorder %s65, 0
    %s68 = sadd.s32 %s67, 1
    %s69 = scalar_select %p66, %s67, %s68
    %p72 = pneg %p66
    %p73 = scmp.eq.s32.totalorder %s9, 31
    %p74 = por %p72, %p73
    %p75 = scmp.ne.s32.totalorder %s67, %s70
    %p76 = scmp.eq.s32.totalorder %s9, 0
    %p77 = por %p75, %p76
    %p78 = scmp.ne.s32.totalorder %s67, %s70
    %p79 = scmp.eq.s32.totalorder %s14, 31
    %p80 = por %p78, %p79
    %p81 = scmp.ne.s32.totalorder %s70, %s71
    %p82 = scmp.eq.s32.totalorder %s14, 0
    %p83 = por %p81, %p82
    %p84 = scmp.ne.s32.totalorder %s70, %s71
    %p85 = scmp.eq.s32.totalorder %s15, 31
    %p86 = por %p84, %p85
    %p88 = scmp.ne.s32.totalorder %s71, %s87
    %p89 = scmp.eq.s32.totalorder %s15, 0
    %p90 = por %p88, %p89
    %s91 = ssub.s32 %s16, %s28
    %p92 = scmp.eq.s32.totalorder %s91, 0
    %s94 = sadd.s32 %s93, 1
    %s95 = scalar_select %p92, %s93, %s94
    %p98 = pneg %p92
    %p99 = scmp.eq.s32.totalorder %s9, 31
    %p100 = por %p98, %p99
    %p101 = scmp.ne.s32.totalorder %s93, %s96
    %p102 = scmp.eq.s32.totalorder %s9, 0
    %p103 = por %p101, %p102
    %p104 = scmp.ne.s32.totalorder %s93, %s96
    %p105 = scmp.eq.s32.totalorder %s14, 31
    %p106 = por %p104, %p105
    %p107 = scmp.ne.s32.totalorder %s96, %s97
    %p108 = scmp.eq.s32.totalorder %s14, 0
    %p109 = por %p107, %p108
    %p110 = scmp.ne.s32.totalorder %s96, %s97
    %p111 = scmp.eq.s32.totalorder %s15, 31
    %p112 = por %p110, %p111
    %p114 = scmp.ne.s32.totalorder %s97, %s113
    %p115 = scmp.eq.s32.totalorder %s15, 0
    %p116 = por %p114, %p115
    %s117 = smul.u32 %s17, 2
    %s118 = ssub.s32 15, %s117
    %s119 = smul.u32 %s16, %s118
    %s120 = sadd.s32 %s17, %s119
    %s121 = smul.u32 %s24, 2
    %s122 = ssub.s32 15, %s121
    %s123 = smul.u32 %s28, %s122
    %s124 = sadd.s32 %s24, %s123
    %s125 = ssub.s32 %s16, %s28
    %s126 = ssub.s32 %s120, %s124
    %s127 = sor.u32 %s125, %s126
    %p128 = scmp.eq.s32.totalorder %s127, 0
    %s130 = sadd.s32 %s129, 1
    %s131 = scalar_select %p128, %s129, %s130
    %p134 = pneg %p128
    %p135 = scmp.eq.s32.totalorder %s9, 31
    %p136 = por %p134, %p135
    %p137 = scmp.ne.s32.totalorder %s129, %s132
    %p138 = scmp.eq.s32.totalorder %s9, 0
    %p139 = por %p137, %p138
    %p140 = scmp.ne.s32.totalorder %s129, %s132
    %p141 = scmp.eq.s32.totalorder %s14, 31
    %p142 = por %p140, %p141
    %p143 = scmp.ne.s32.totalorder %s132, %s133
    %p144 = scmp.eq.s32.totalorder %s14, 0
    %p145 = por %p143, %p144
    %p146 = scmp.ne.s32.totalorder %s132, %s133
    %p147 = scmp.eq.s32.totalorder %s15, 31
    %p148 = por %p146, %p147
    %p150 = scmp.ne.s32.totalorder %s133, %s149
    %p151 = scmp.eq.s32.totalorder %s15, 0
    %p152 = por %p150, %p151
    %p153 = scmp.le.s32.totalorder 1, %s9
    %p154 = scmp.lt.s32.totalorder %s9, 33
    %p155 = pnand %p153, %p154
    %p156 = pneg %p155
    // Predicated region
    $region9: #{enc_mtan_gru_forward.3} parent=5 // pred_check
      _
    $region10: #{enc_mtan_gru_forward.3} parent=5 // pred_check_branch
      %158 = sbr.rel (%p155) target = $region12
    $region11: #{enc_mtan_gru_forward.3} parent=5 // pred_region
      %s159 = ssub.s32 %s9, 1
    $region12: #{enc_mtan_gru_forward.3} parent=5 // pred_fallthru
      _
    %p160 = scmp.lt.s32.totalorder %s9, 32
    // Predicated region
    $region13: #{enc_mtan_gru_forward.3} parent=5 // pred_check
      %p161 = pneg %p160
    $region14: #{enc_mtan_gru_forward.3} parent=5 // pred_check_branch
      %163 = sbr.rel (%p161) target = $region16
    $region15: #{enc_mtan_gru_forward.3} parent=5 // pred_region
      // Predicated region
      $region17: #{enc_mtan_gru_forward.3} parent=15 // pred_check
        %p164 = pneg %p51
      $region18: #{enc_mtan_gru_forward.3} parent=15 // pred_check_branch
        %166 = sbr.rel (%p164) target = $region20
      $region19: #{enc_mtan_gru_forward.3} parent=15 // pred_region
        %s167 = smul.u32 %s17, 2
        %s168 = ssub.s32 15, %s167
        %s169 = smul.u32 %s16, %s168
        %s170 = sadd.s32 %s17, %s169
        %p171 = scmp.lt.s32.totalorder %s16, 1
        %s172 = scalar_select %p171, %s16, 1
        %p173 = scmp.lt.s32.totalorder %s170, 15
        %s174 = scalar_select %p173, %s170, 15
        %s175 = smul.addr %s172, 16
        %s176 = sadd.s32 %s174, %s175
        %s177 = smul.addr %s176, 2
        %s178 = scalar_lea.vmem %s0, %s177
        %s179 = smul.u32 %s17, 2
        %s180 = ssub.s32 15, %s179
        %s181 = smul.u32 %s16, %s180
        %s182 = sadd.s32 %s17, %s181
      $region20: #{enc_mtan_gru_forward.3} parent=15 // pred_fallthru
        _
      // Predicated region
      $region21: #{enc_mtan_gru_forward.3} parent=15 // pred_check
        %p183 = pneg %p77
      $region22: #{enc_mtan_gru_forward.3} parent=15 // pred_check_branch
        %185 = sbr.rel (%p183) target = $region24
      $region23: #{enc_mtan_gru_forward.3} parent=15 // pred_region
        %p186 = scmp.lt.s32.totalorder %s16, 1
        %s187 = scalar_select %p186, %s16, 1
        %s188 = smul.addr %s187, 4
        %s189 = smul.addr %s188, 8
        %s190 = scalar_lea.vmem %s1, %s189
      $region24: #{enc_mtan_gru_forward.3} parent=15 // pred_fallthru
        _
      // Predicated region
      $region25: #{enc_mtan_gru_forward.3} parent=15 // pred_check
        %p191 = pneg %p103
      $region26: #{enc_mtan_gru_forward.3} parent=15 // pred_check_branch
        %193 = sbr.rel (%p191) target = $region28
      $region27: #{enc_mtan_gru_forward.3} parent=15 // pred_region
        %p194 = scmp.lt.s32.totalorder %s16, 1
        %s195 = scalar_select %p194, %s16, 1
        %s196 = scalar_lea.vmem %s2, %s195
      $region28: #{enc_mtan_gru_forward.3} parent=15 // pred_fallthru
        _
    $region16: #{enc_mtan_gru_forward.3} parent=5 // pred_fallthru
      _
    %p197 = scmp.le.s32.totalorder 1, %s9
    %p198 = scmp.lt.s32.totalorder %s9, 33
    %p199 = pnand %p197, %p198
    %p200 = pneg %p199
    // Predicated region
    $region29: #{enc_mtan_gru_forward.3} parent=5 // pred_check
      _
    $region30: #{enc_mtan_gru_forward.3} parent=5 // pred_check_branch
      %202 = sbr.rel (%p199) target = $region32
    $region31: #{enc_mtan_gru_forward.3} parent=5 // pred_region
      %s203 = ssub.s32 %s9, 1
      %s204 = smul.u32 %s19, 2
      %s205 = ssub.s32 15, %s204
      %s206 = smul.u32 %s18, %s205
      %s207 = sadd.s32 %s19, %s206
      %p208 = scmp.lt.s32.totalorder %s18, 1
      %s209 = scalar_select %p208, %s18, 1
      %p210 = scmp.lt.s32.totalorder %s207, 15
      %s211 = scalar_select %p210, %s207, 15
      %s212 = smul.addr %s209, 16
      %s213 = sadd.s32 %s211, %s212
      %s214 = smul.addr %s213, 2
      %s215 = scalar_lea.vmem %s0, %s214
      %p216 = pneg %p57
      %p217 = pneg %p54
      %p218 = scmp.lt.s32.totalorder %s18, 1
      %s219 = scalar_select %p218, %s18, 1
      %s220 = smul.addr %s219, 4
      %s221 = smul.addr %s220, 8
      %s222 = scalar_lea.vmem %s1, %s221
      %p223 = pneg %p83
      %p224 = pneg %p80
      %p225 = scmp.lt.s32.totalorder %s18, 1
      %s226 = scalar_select %p225, %s18, 1
      %s227 = scalar_lea.vmem %s2, %s226
      %p228 = pneg %p109
      %p229 = pneg %p106
      %p230 = pneg %p145
      %p231 = pneg %p142
      %s232 = smul.u32 %s19, 2
      %s233 = ssub.s32 15, %s232
      %s234 = smul.u32 %s18, %s233
      %s235 = sadd.s32 %s19, %s234
      %p236 = scmp.lt.s32.totalorder %s18, 1
      %s237 = scalar_select %p236, %s18, 1
      %p238 = scmp.lt.s32.totalorder %s235, 15
      %s239 = scalar_select %p238, %s235, 15
      %s240 = smul.addr %s237, 16
      %s241 = sadd.s32 %s239, %s240
      %s242 = smul.addr %s241, 2
      %s243 = scalar_lea.vmem %s3, %s242
      %s244 = smul.u32 %s19, 2
      %s245 = ssub.s32 15, %s244
      %s246 = smul.u32 %s18, %s245
      %s247 = sadd.s32 %s19, %s246
      %p248 = scmp.lt.s32.totalorder %s18, 1
      %s249 = scalar_select %p248, %s18, 1
      %p250 = scmp.lt.s32.totalorder %s247, 15
      %s251 = scalar_select %p250, %s247, 15
      %s252 = smul.addr %s249, 16
      %s253 = sadd.s32 %s251, %s252
      %s254 = smul.addr %s253, 2
      %s255 = scalar_lea.vmem %s0, %s254
      %s256 = smul.u32 %s19, 2
      %s257 = ssub.s32 15, %s256
      %s258 = smul.u32 %s18, %s257
      %s259 = sadd.s32 %s19, %s258
      %p260 = scmp.lt.s32.totalorder %s18, 1
      %s261 = scalar_select %p260, %s18, 1
      %s262 = smul.addr %s261, 4
      %s263 = smul.addr %s262, 8
      %s264 = scalar_lea.vmem %s1, %s263
      %p265 = scmp.lt.s32.totalorder %s18, 1
      %s266 = scalar_select %p265, %s18, 1
      %s267 = scalar_lea.vmem %s2, %s266
      %s268 = smul.u32 %s19, 2
      %s269 = ssub.s32 15, %s268
      %s270 = smul.u32 %s18, %s269
      %s271 = sadd.s32 %s19, %s270
      %p272 = scmp.lt.s32.totalorder %s18, 1
      %s273 = scalar_select %p272, %s18, 1
      %p274 = scmp.lt.s32.totalorder %s271, 15
      %s275 = scalar_select %p274, %s271, 15
      %s276 = smul.addr %s273, 16
      %s277 = sadd.s32 %s275, %s276
      %s278 = smul.addr %s277, 2
      %s279 = scalar_lea.vmem %s3, %s278
      %s280 = smul.u32 %s19, 2
      %s281 = ssub.s32 15, %s280
      %s282 = smul.u32 %s18, %s281
      %s283 = sadd.s32 %s19, %s282
      %p284 = scmp.eq.s32.totalorder %s19, 0
      // Predicated region
      $region33: #{enc_mtan_gru_forward.3} parent=31 // pred_check
        %p285 = pneg %p284
      $region34: #{enc_mtan_gru_forward.3} parent=31 // pred_check_branch
        %287 = sbr.rel (%p285) target = $region36
      $region35: #{enc_mtan_gru_forward.3} parent=31 // pred_region
        %vm288 = vcmask 254976
        %289 = vst.msk [vmem:[#allocation2] sm:$0x3] %vm288, 0.0
      $region36: #{enc_mtan_gru_forward.3} parent=31 // pred_fallthru
        _
      %v290 = vld [vmem:[#allocation2] sm:$0x3]
      %v291 = vld [vmem:[%s255] sm:$0x3]
      %v292 = vld [vmem:[%s264] sm:$0xff]
      %v293 = vld [vmem:[%s264 + $0x8] sm:$0xff]
      %v294 = vld [vmem:[%s264 + $0x10] sm:$0xff]
      %v295 = vld [vmem:[%s264 + $0x18] sm:$0xff]
      %v296 = vld [vmem:[%s267] sm:$0x1]
      %v298 = vlaneseq
      %v299 = vshrl.u32 %v298, 7
      %v300 = vsub.s32 0, %v299
      %v301 = vrot.slane %v296, %v300
      %vm303 = vcmask 261120
      %v305 = vsel %vm303, %v290, 0
      %307 = vmatprep.subr.mxu0 0.0
      %308 = vmatpush1.msra.mxu0 %v292
      %309 = vmatprep.subr.mxu0 0.0
      %310 = vmatpush1.msra.mxu0 %v293
      %311 = vmatprep.subr.mxu0 0.0
      %312 = vmatpush1.msra.mxu0 %v294
      %313 = vmatprep.subr.mxu0 0.0
      %314 = vmatpush1.msra.mxu0 %v295
      %315 = vmatprep.subr.mxu0 0.0
      %316 = vmatpush1.msra.mxu0 0.0
      %317 = vmatprep.subr.mxu0 0.0
      %318 = vmatpush1.msra.mxu0 0.0
      %319 = vmatprep.subr.mxu0 0.0
      %320 = vmatpush1.msra.mxu0 0.0
      %321 = vmatprep.subr.mxu0 0.0
      %322 = vmatpush1.msra.mxu0 0.0
      %323 = vmatprep.subr.mxu0 0.0
      %324 = vmatpush1.msra.mxu0 0.0
      %325 = vmatprep.subr.mxu0 0.0
      %326 = vmatpush1.msra.mxu0 0.0
      %327 = vmatprep.subr.mxu0 0.0
      %328 = vmatpush1.msra.mxu0 0.0
      %329 = vmatprep.subr.mxu0 0.0
      %330 = vmatpush1.msra.mxu0 0.0
      %331 = vmatprep.subr.mxu0 0.0
      %332 = vmatpush1.msra.mxu0 0.0
      %333 = vmatprep.subr.mxu0 0.0
      %334 = vmatpush1.msra.mxu0 0.0
      %335 = vmatprep.subr.mxu0 0.0
      %336 = vmatpush1.msra.mxu0 0.0
      %337 = vmatprep.subr.mxu0 0.0
      %338 = vmatpush1.msra.mxu0 0.0
      %339 = vmatprep.subr.mxu0 0.0
      %340 = vmatpush1.msra.mxu0 0.0
      %341 = vmatprep.subr.mxu0 0.0
      %342 = vmatpush1.msra.mxu0 0.0
      %343 = vmatprep.subr.mxu0 0.0
      %344 = vmatpush1.msra.mxu0 0.0
      %345 = vmatprep.subr.mxu0 0.0
      %346 = vmatpush1.msra.mxu0 0.0
      %347 = vmatprep.subr.mxu0 0.0
      %348 = vmatpush1.msra.mxu0 0.0
      %349 = vmatprep.subr.mxu0 0.0
      %350 = vmatpush1.msra.mxu0 0.0
      %351 = vmatprep.subr.mxu0 0.0
      %352 = vmatpush1.msra.mxu0 0.0
      %353 = vmatprep.subr.mxu0 0.0
      %354 = vmatpush1.msra.mxu0 0.0
      %355 = vmatprep.subr.mxu0 0.0
      %356 = vmatpush1.msra.mxu0 0.0
      %357 = vmatprep.subr.mxu0 0.0
      %358 = vmatpush1.msra.mxu0 0.0
      %359 = vmatprep.subr.mxu0 0.0
      %360 = vmatpush1.msra.mxu0 0.0
      %361 = vmatprep.subr.mxu0 0.0
      %362 = vmatpush1.msra.mxu0 0.0
      %363 = vmatprep.subr.mxu0 0.0
      %364 = vmatpush1.msra.mxu0 0.0
      %365 = vmatprep.subr.mxu0 0.0
      %366 = vmatpush1.msra.mxu0 0.0
      %367 = vmatprep.subr.mxu0 0.0
      %368 = vmatpush1.msra.mxu0 0.0
      %369 = vmatprep.subr.mxu0 0.0
      %370 = vmatpush1.msra.mxu0 0.0
      %371 = vmatprep.mubr.f32.mxu0 0.0
      %372 = vmatmul.mubr.f32.gmra.mrb[0].mxu0 %v305
      %v373 = vpop.f32.mrb[0].mxu0
      %v374 = vadd.f32 %v301, %v373
      %v375 = vpop.f32.mrb[0].mxu0
      %376 = vdwg.mxu0
      %v377 = vadd.f32 %v291, %v374
      %v378 = vxor.u32 %v377, 2147483648
      %v379 = vmul.f32 %v378, 1.442695
      %v380 = vpow.pop %v379
      %v381 = vadd.f32 %v380, 1.0
      %v382 = vrcp.pop %v381
      %v383 = vmul.f32 1.0, %v382
      %385 = vrot.lane.b32.xlu0 %v374, 64
      %v386 = vpop.permute.xlu0 %385
      %v388 = vmul.f32 %v383, %v386
      %390 = vrot.lane.b32.xlu0 %v388, 64
      %v391 = vpop.permute.xlu0 %390
      %v393 = vadd.f32 %v291, %v391
      %v394 = vtanh.pop %v393
      %v395 = vsub.f32 1.0, %v383
      %397 = vrot.lane.b32.xlu0 %v394, 96
      %v398 = vpop.permute.xlu0 %397
      %v400 = vmul.f32 %v395, %v398
      %401 = vrot.lane.b32.xlu0 %v290, 32
      %v402 = vpop.permute.xlu0 %401
      %v404 = vmul.f32 %v383, %v402
      %v405 = vadd.f32 %v400, %v404
      %407 = vrot.lane.b32.xlu0 %v405, 96
      %v408 = vpop.permute.xlu0 %407
      %vm410 = vcmask 254976
      %411 = vst.msk [vmem:[#allocation2] sm:$0x3] %vm410, %v408
      %412 = vst.msk [vmem:[%s279] sm:$0x3] %vm410, %v408
      %s413 = smul.u32 %s19, 2
      %s414 = ssub.s32 15, %s413
      %s415 = smul.u32 %s18, %s414
      %s416 = sadd.s32 %s19, %s415
      %p417 = scmp.lt.s32.totalorder %s18, 1
      %s418 = scalar_select %p417, %s18, 1
      %p419 = scmp.lt.s32.totalorder %s416, 15
      %s420 = scalar_select %p419, %s416, 15
      %s421 = smul.addr %s418, 16
      %s422 = sadd.s32 %s420, %s421
      %s423 = smul.addr %s422, 2
      %s424 = scalar_lea.vmem %s3, %s423
      // Predicated region
      $region37: #{enc_mtan_gru_forward.3} parent=31 // pred_check
        %p425 = pneg %p142
      $region38: #{enc_mtan_gru_forward.3} parent=31 // pred_check_branch
        %427 = sbr.rel (%p425) target = $region40
      $region39: #{enc_mtan_gru_forward.3} parent=31 // pred_region
        %s428 = smul.u32 %s19, 2
        %s429 = ssub.s32 15, %s428
        %s430 = smul.u32 %s18, %s429
        %s431 = sadd.s32 %s19, %s430
      $region40: #{enc_mtan_gru_forward.3} parent=31 // pred_fallthru
        _
    $region32: #{enc_mtan_gru_forward.3} parent=5 // pred_fallthru
      _
    %p432 = scmp.le.s32.totalorder 2, %s9
    // Predicated region
    $region41: #{enc_mtan_gru_forward.3} parent=5 // pred_check
      %p433 = pneg %p432
    $region42: #{enc_mtan_gru_forward.3} parent=5 // pred_check_branch
      %435 = sbr.rel (%p433) target = $region44
    $region43: #{enc_mtan_gru_forward.3} parent=5 // pred_region
      %s436 = ssub.s32 %s9, 2
      // Predicated region
      $region45: #{enc_mtan_gru_forward.3} parent=43 // pred_check
        %p437 = pneg %p148
      $region46: #{enc_mtan_gru_forward.3} parent=43 // pred_check_branch
        %439 = sbr.rel (%p437) target = $region48
      $region47: #{enc_mtan_gru_forward.3} parent=43 // pred_region
        %s440 = smul.u32 %s21, 2
        %s441 = ssub.s32 15, %s440
        %s442 = smul.u32 %s20, %s441
        %s443 = sadd.s32 %s21, %s442
        %p444 = scmp.lt.s32.totalorder %s20, 1
        %s445 = scalar_select %p444, %s20, 1
        %p446 = scmp.lt.s32.totalorder %s443, 15
        %s447 = scalar_select %p446, %s443, 15
        %s448 = smul.addr %s445, 16
        %s449 = sadd.s32 %s447, %s448
        %s450 = smul.addr %s449, 2
        %s451 = scalar_lea.vmem %s3, %s450
      $region48: #{enc_mtan_gru_forward.3} parent=43 // pred_fallthru
        _
    $region44: #{enc_mtan_gru_forward.3} parent=5 // pred_fallthru
      _
  $region6: #{enc_mtan_gru_forward.3} parent=0 // loop_footer
    %s13 = sadd.s32 1, %s9
  $region7: #{enc_mtan_gru_forward.3} parent=0 // loop_footer_branch
    %8 = sbr.rel target = $region3
  $region8: #{enc_mtan_gru_forward.3} parent=0 // loop_exit
    _

// kernel: enc_mtan_gru_forward.2
$region0: #{enc_mtan_gru_forward.2}
  #allocation0 [shape = 'u32[]', space=smem, size = 0x4, offset = 0x4, fixed_abs, tag = 'smem constant byte address 0x4 - core index']
  #allocation1 [shape = 'u32[144,128]{1,0:T(1,128)}', space=vmem, size = 0x12000, scoped, tag = 'internal scratch']
  %s0 = inlined_call_operand.vmem [shape: f32[2,8,1], index: 0, kind: input, shape index: {}]
  %s1 = inlined_call_operand.vmem [shape: f32[16,1], index: 1, kind: input, shape index: {}]
  %s2 = inlined_call_operand.vmem [shape: f32[2,4,1,8], index: 2, kind: input, shape index: {}]
  %s3 = inlined_call_operand.vmem [shape: f32[2,4,1,8], index: 3, kind: input, shape index: {}]
  %s4 = inlined_call_operand.vmem [shape: f32[1,16], index: 4, kind: input, shape index: {}]
  %s5 = inlined_call_operand.vmem [shape: f32[1,16], index: 5, kind: input, shape index: {}]
  %s6 = inlined_call_operand.vmem [shape: f32[16,16], index: 6, kind: input, shape index: {}]
  %s7 = inlined_call_operand.vmem [shape: f32[1,16], index: 7, kind: input, shape index: {}]
  %s8 = inlined_call_operand.vmem [shape: f32[16,16], index: 8, kind: input, shape index: {}]
  %s9 = inlined_call_operand.vmem [shape: f32[1,16], index: 9, kind: input, shape index: {}]
  %s10 = inlined_call_operand.vmem [shape: f32[2,96,4], index: 10, kind: input, shape index: {}]
  %s11 = inlined_call_operand.vmem [shape: f32[2,96,1], index: 11, kind: input, shape index: {}]
  %s12 = inlined_call_operand.vmem [shape: f32[2,96,16], index: 12, kind: output, shape index: {0}]
  %s13 = inlined_call_operand.vmem [shape: f32[2,96,16], index: 13, kind: output, shape index: {1}]
  %14 = xla_tuple %s12, %s13
  %s15 = sld [smem:[#allocation0]]
  $region89: #{enc_mtan_gru_forward.2} parent=0
    _
  %s17 = ssub.s32 1, %s15
  %s18 = scalar_select 0, %s17, %s15
  loop: start=0, step=1, limit=4
  $region2: #{enc_mtan_gru_forward.2} parent=0 // loop_pre_header
    _
  $region3: #{enc_mtan_gru_forward.2} parent=0 // loop_header
    %s20 = sphi 0, %s24
    %p21 = scmp.ge.s32.totalorder %s20, 4
    %s30 = sphi 0, %s32
    %s33 = sphi 0, %s30
    %s34 = sphi 0, %s33
    %s50 = sphi 0, %s34
    %s54 = sphi 0, %s54
    %s56 = sphi 0, %s54
    %s57 = sphi 0, %s56
    %s71 = sphi 0, %s57
    %s77 = sphi 0, %s79
    %s80 = sphi 0, %s77
    %s81 = sphi 0, %s80
    %s97 = sphi 0, %s81
    %s103 = sphi 0, %s105
    %s106 = sphi 0, %s103
    %s107 = sphi 0, %s106
    %s123 = sphi 0, %s107
    %s127 = sphi 0, %s127
    %s129 = sphi 0, %s127
    %s130 = sphi 0, %s129
    %s144 = sphi 0, %s130
    %s148 = sphi 0, %s148
    %s150 = sphi 0, %s148
    %s151 = sphi 0, %s150
    %s165 = sphi 0, %s151
    %s169 = sphi 0, %s169
    %s171 = sphi 0, %s169
    %s172 = sphi 0, %s171
    %s186 = sphi 0, %s172
    %s190 = sphi 0, %s190
    %s192 = sphi 0, %s190
    %s193 = sphi 0, %s192
    %s207 = sphi 0, %s193
    %s211 = sphi 0, %s211
    %s213 = sphi 0, %s211
    %s214 = sphi 0, %s213
    %s228 = sphi 0, %s214
    %s232 = sphi 0, %s232
    %s234 = sphi 0, %s232
    %s235 = sphi 0, %s234
    %s249 = sphi 0, %s235
    %s253 = sphi 0, %s253
    %s255 = sphi 0, %s253
    %s256 = sphi 0, %s255
    %s270 = sphi 0, %s256
    %s274 = sphi 0, %s274
    %s276 = sphi 0, %s274
    %s277 = sphi 0, %s276
    %s291 = sphi 0, %s277
    %s297 = sphi 0, %s299
    %s300 = sphi 0, %s297
    %s301 = sphi 0, %s300
    %s317 = sphi 0, %s301
    %s323 = sphi 0, %s325
    %s326 = sphi 0, %s323
    %s327 = sphi 0, %s326
    %s343 = sphi 0, %s327
  $region4: #{enc_mtan_gru_forward.2} parent=0 // loop_header_branch
    %23 = sbr.rel (%p21) target = $region8
  $region5: #{enc_mtan_gru_forward.2} parent=0 // loop_body
    %s25 = ssub.s32 %s20, 1
    %s26 = ssub.s32 %s20, 2
    %s27 = sadd.s32 %s20, 1
    %s28 = ssub.s32 %s20, %s27
    %p29 = scmp.eq.s32.totalorder %s28, 0
    %s31 = sadd.s32 %s30, 1
    %s32 = scalar_select %p29, %s30, %s31
    %p35 = pneg %p29
    %p36 = scmp.eq.s32.totalorder %s20, 1
    %p37 = por %p35, %p36
    %p38 = scmp.ne.s32.totalorder %s30, %s33
    %p39 = scmp.eq.s32.totalorder %s20, 0
    %p40 = por %p38, %p39
    %p41 = scmp.ne.s32.totalorder %s30, %s33
    %p42 = scmp.eq.s32.totalorder %s25, 1
    %p43 = por %p41, %p42
    %p44 = scmp.ne.s32.totalorder %s33, %s34
    %p45 = scmp.eq.s32.totalorder %s25, 0
    %p46 = por %p44, %p45
    %p47 = scmp.ne.s32.totalorder %s33, %s34
    %p48 = scmp.eq.s32.totalorder %s26, 1
    %p49 = por %p47, %p48
    %p51 = scmp.ne.s32.totalorder %s34, %s50
    %p52 = scmp.eq.s32.totalorder %s26, 0
    %p53 = por %p51, %p52
    %s55 = sadd.s32 %s54, 1
    %p58 = scmp.eq.s32.totalorder %s20, 1
    %p59 = scmp.ne.s32.totalorder %s54, %s56
    %p60 = scmp.eq.s32.totalorder %s20, 0
    %p61 = por %p59, %p60
    %p62 = scmp.ne.s32.totalorder %s54, %s56
    %p63 = scmp.eq.s32.totalorder %s25, 1
    %p64 = por %p62, %p63
    %p65 = scmp.ne.s32.totalorder %s56, %s57
    %p66 = scmp.eq.s32.totalorder %s25, 0
    %p67 = por %p65, %p66
    %p68 = scmp.ne.s32.totalorder %s56, %s57
    %p69 = scmp.eq.s32.totalorder %s26, 1
    %p70 = por %p68, %p69
    %p72 = scmp.ne.s32.totalorder %s57, %s71
    %p73 = scmp.eq.s32.totalorder %s26, 0
    %p74 = por %p72, %p73
    %s75 = ssub.s32 %s20, %s27
    %p76 = scmp.eq.s32.totalorder %s75, 0
    %s78 = sadd.s32 %s77, 1
    %s79 = scalar_select %p76, %s77, %s78
    %p82 = pneg %p76
    %p83 = scmp.eq.s32.totalorder %s20, 1
    %p84 = por %p82, %p83
    %p85 = scmp.ne.s32.totalorder %s77, %s80
    %p86 = scmp.eq.s32.totalorder %s20, 0
    %p87 = por %p85, %p86
    %p88 = scmp.ne.s32.totalorder %s77, %s80
    %p89 = scmp.eq.s32.totalorder %s25, 1
    %p90 = por %p88, %p89
    %p91 = scmp.ne.s32.totalorder %s80, %s81
    %p92 = scmp.eq.s32.totalorder %s25, 0
    %p93 = por %p91, %p92
    %p94 = scmp.ne.s32.totalorder %s80, %s81
    %p95 = scmp.eq.s32.totalorder %s26, 1
    %p96 = por %p94, %p95
    %p98 = scmp.ne.s32.totalorder %s81, %s97
    %p99 = scmp.eq.s32.totalorder %s26, 0
    %p100 = por %p98, %p99
    %s101 = ssub.s32 %s20, %s27
    %p102 = scmp.eq.s32.totalorder %s101, 0
    %s104 = sadd.s32 %s103, 1
    %s105 = scalar_select %p102, %s103, %s104
    %p108 = pneg %p102
    %p109 = scmp.eq.s32.totalorder %s20, 1
    %p110 = por %p108, %p109
    %p111 = scmp.ne.s32.totalorder %s103, %s106
    %p112 = scmp.eq.s32.totalorder %s20, 0
    %p113 = por %p111, %p112
    %p114 = scmp.ne.s32.totalorder %s103, %s106
    %p115 = scmp.eq.s32.totalorder %s25, 1
    %p116 = por %p114, %p115
    %p117 = scmp.ne.s32.totalorder %s106, %s107
    %p118 = scmp.eq.s32.totalorder %s25, 0
    %p119 = por %p117, %p118
    %p120 = scmp.ne.s32.totalorder %s106, %s107
    %p121 = scmp.eq.s32.totalorder %s26, 1
    %p122 = por %p120, %p121
    %p124 = scmp.ne.s32.totalorder %s107, %s123
    %p125 = scmp.eq.s32.totalorder %s26, 0
    %p126 = por %p124, %p125
    %s128 = sadd.s32 %s127, 1
    %p131 = scmp.eq.s32.totalorder %s20, 1
    %p132 = scmp.ne.s32.totalorder %s127, %s129
    %p133 = scmp.eq.s32.totalorder %s20, 0
    %p134 = por %p132, %p133
    %p135 = scmp.ne.s32.totalorder %s127, %s129
    %p136 = scmp.eq.s32.totalorder %s25, 1
    %p137 = por %p135, %p136
    %p138 = scmp.ne.s32.totalorder %s129, %s130
    %p139 = scmp.eq.s32.totalorder %s25, 0
    %p140 = por %p138, %p139
    %p141 = scmp.ne.s32.totalorder %s129, %s130
    %p142 = scmp.eq.s32.totalorder %s26, 1
    %p143 = por %p141, %p142
    %p145 = scmp.ne.s32.totalorder %s130, %s144
    %p146 = scmp.eq.s32.totalorder %s26, 0
    %p147 = por %p145, %p146
    %s149 = sadd.s32 %s148, 1
    %p152 = scmp.eq.s32.totalorder %s20, 1
    %p153 = scmp.ne.s32.totalorder %s148, %s150
    %p154 = scmp.eq.s32.totalorder %s20, 0
    %p155 = por %p153, %p154
    %p156 = scmp.ne.s32.totalorder %s148, %s150
    %p157 = scmp.eq.s32.totalorder %s25, 1
    %p158 = por %p156, %p157
    %p159 = scmp.ne.s32.totalorder %s150, %s151
    %p160 = scmp.eq.s32.totalorder %s25, 0
    %p161 = por %p159, %p160
    %p162 = scmp.ne.s32.totalorder %s150, %s151
    %p163 = scmp.eq.s32.totalorder %s26, 1
    %p164 = por %p162, %p163
    %p166 = scmp.ne.s32.totalorder %s151, %s165
    %p167 = scmp.eq.s32.totalorder %s26, 0
    %p168 = por %p166, %p167
    %s170 = sadd.s32 %s169, 1
    %p173 = scmp.eq.s32.totalorder %s20, 1
    %p174 = scmp.ne.s32.totalorder %s169, %s171
    %p175 = scmp.eq.s32.totalorder %s20, 0
    %p176 = por %p174, %p175
    %p177 = scmp.ne.s32.totalorder %s169, %s171
    %p178 = scmp.eq.s32.totalorder %s25, 1
    %p179 = por %p177, %p178
    %p180 = scmp.ne.s32.totalorder %s171, %s172
    %p181 = scmp.eq.s32.totalorder %s25, 0
    %p182 = por %p180, %p181
    %p183 = scmp.ne.s32.totalorder %s171, %s172
    %p184 = scmp.eq.s32.totalorder %s26, 1
    %p185 = por %p183, %p184
    %p187 = scmp.ne.s32.totalorder %s172, %s186
    %p188 = scmp.eq.s32.totalorder %s26, 0
    %p189 = por %p187, %p188
    %s191 = sadd.s32 %s190, 1
    %p194 = scmp.eq.s32.totalorder %s20, 1
    %p195 = scmp.ne.s32.totalorder %s190, %s192
    %p196 = scmp.eq.s32.totalorder %s20, 0
    %p197 = por %p195, %p196
    %p198 = scmp.ne.s32.totalorder %s190, %s192
    %p199 = scmp.eq.s32.totalorder %s25, 1
    %p200 = por %p198, %p199
    %p201 = scmp.ne.s32.totalorder %s192, %s193
    %p202 = scmp.eq.s32.totalorder %s25, 0
    %p203 = por %p201, %p202
    %p204 = scmp.ne.s32.totalorder %s192, %s193
    %p205 = scmp.eq.s32.totalorder %s26, 1
    %p206 = por %p204, %p205
    %p208 = scmp.ne.s32.totalorder %s193, %s207
    %p209 = scmp.eq.s32.totalorder %s26, 0
    %p210 = por %p208, %p209
    %s212 = sadd.s32 %s211, 1
    %p215 = scmp.eq.s32.totalorder %s20, 1
    %p216 = scmp.ne.s32.totalorder %s211, %s213
    %p217 = scmp.eq.s32.totalorder %s20, 0
    %p218 = por %p216, %p217
    %p219 = scmp.ne.s32.totalorder %s211, %s213
    %p220 = scmp.eq.s32.totalorder %s25, 1
    %p221 = por %p219, %p220
    %p222 = scmp.ne.s32.totalorder %s213, %s214
    %p223 = scmp.eq.s32.totalorder %s25, 0
    %p224 = por %p222, %p223
    %p225 = scmp.ne.s32.totalorder %s213, %s214
    %p226 = scmp.eq.s32.totalorder %s26, 1
    %p227 = por %p225, %p226
    %p229 = scmp.ne.s32.totalorder %s214, %s228
    %p230 = scmp.eq.s32.totalorder %s26, 0
    %p231 = por %p229, %p230
    %s233 = sadd.s32 %s232, 1
    %p236 = scmp.eq.s32.totalorder %s20, 1
    %p237 = scmp.ne.s32.totalorder %s232, %s234
    %p238 = scmp.eq.s32.totalorder %s20, 0
    %p239 = por %p237, %p238
    %p240 = scmp.ne.s32.totalorder %s232, %s234
    %p241 = scmp.eq.s32.totalorder %s25, 1
    %p242 = por %p240, %p241
    %p243 = scmp.ne.s32.totalorder %s234, %s235
    %p244 = scmp.eq.s32.totalorder %s25, 0
    %p245 = por %p243, %p244
    %p246 = scmp.ne.s32.totalorder %s234, %s235
    %p247 = scmp.eq.s32.totalorder %s26, 1
    %p248 = por %p246, %p247
    %p250 = scmp.ne.s32.totalorder %s235, %s249
    %p251 = scmp.eq.s32.totalorder %s26, 0
    %p252 = por %p250, %p251
    %s254 = sadd.s32 %s253, 1
    %p257 = scmp.eq.s32.totalorder %s20, 1
    %p258 = scmp.ne.s32.totalorder %s253, %s255
    %p259 = scmp.eq.s32.totalorder %s20, 0
    %p260 = por %p258, %p259
    %p261 = scmp.ne.s32.totalorder %s253, %s255
    %p262 = scmp.eq.s32.totalorder %s25, 1
    %p263 = por %p261, %p262
    %p264 = scmp.ne.s32.totalorder %s255, %s256
    %p265 = scmp.eq.s32.totalorder %s25, 0
    %p266 = por %p264, %p265
    %p267 = scmp.ne.s32.totalorder %s255, %s256
    %p268 = scmp.eq.s32.totalorder %s26, 1
    %p269 = por %p267, %p268
    %p271 = scmp.ne.s32.totalorder %s256, %s270
    %p272 = scmp.eq.s32.totalorder %s26, 0
    %p273 = por %p271, %p272
    %s275 = sadd.s32 %s274, 1
    %p278 = scmp.eq.s32.totalorder %s20, 1
    %p279 = scmp.ne.s32.totalorder %s274, %s276
    %p280 = scmp.eq.s32.totalorder %s20, 0
    %p281 = por %p279, %p280
    %p282 = scmp.ne.s32.totalorder %s274, %s276
    %p283 = scmp.eq.s32.totalorder %s25, 1
    %p284 = por %p282, %p283
    %p285 = scmp.ne.s32.totalorder %s276, %s277
    %p286 = scmp.eq.s32.totalorder %s25, 0
    %p287 = por %p285, %p286
    %p288 = scmp.ne.s32.totalorder %s276, %s277
    %p289 = scmp.eq.s32.totalorder %s26, 1
    %p290 = por %p288, %p289
    %p292 = scmp.ne.s32.totalorder %s277, %s291
    %p293 = scmp.eq.s32.totalorder %s26, 0
    %p294 = por %p292, %p293
    %s295 = ssub.s32 %s20, %s27
    %p296 = scmp.eq.s32.totalorder %s295, 0
    %s298 = sadd.s32 %s297, 1
    %s299 = scalar_select %p296, %s297, %s298
    %p302 = pneg %p296
    %p303 = scmp.eq.s32.totalorder %s20, 1
    %p304 = por %p302, %p303
    %p305 = scmp.ne.s32.totalorder %s297, %s300
    %p306 = scmp.eq.s32.totalorder %s20, 0
    %p307 = por %p305, %p306
    %p308 = scmp.ne.s32.totalorder %s297, %s300
    %p309 = scmp.eq.s32.totalorder %s25, 1
    %p310 = por %p308, %p309
    %p311 = scmp.ne.s32.totalorder %s300, %s301
    %p312 = scmp.eq.s32.totalorder %s25, 0
    %p313 = por %p311, %p312
    %p314 = scmp.ne.s32.totalorder %s300, %s301
    %p315 = scmp.eq.s32.totalorder %s26, 1
    %p316 = por %p314, %p315
    %p318 = scmp.ne.s32.totalorder %s301, %s317
    %p319 = scmp.eq.s32.totalorder %s26, 0
    %p320 = por %p318, %p319
    %s321 = ssub.s32 %s20, %s27
    %p322 = scmp.eq.s32.totalorder %s321, 0
    %s324 = sadd.s32 %s323, 1
    %s325 = scalar_select %p322, %s323, %s324
    %p328 = pneg %p322
    %p329 = scmp.eq.s32.totalorder %s20, 1
    %p330 = por %p328, %p329
    %p331 = scmp.ne.s32.totalorder %s323, %s326
    %p332 = scmp.eq.s32.totalorder %s20, 0
    %p333 = por %p331, %p332
    %p334 = scmp.ne.s32.totalorder %s323, %s326
    %p335 = scmp.eq.s32.totalorder %s25, 1
    %p336 = por %p334, %p335
    %p337 = scmp.ne.s32.totalorder %s326, %s327
    %p338 = scmp.eq.s32.totalorder %s25, 0
    %p339 = por %p337, %p338
    %p340 = scmp.ne.s32.totalorder %s326, %s327
    %p341 = scmp.eq.s32.totalorder %s26, 1
    %p342 = por %p340, %p341
    %p344 = scmp.ne.s32.totalorder %s327, %s343
    %p345 = scmp.eq.s32.totalorder %s26, 0
    %p346 = por %p344, %p345
    %p347 = scmp.le.s32.totalorder 1, %s20
    %p348 = scmp.lt.s32.totalorder %s20, 3
    %p349 = pnand %p347, %p348
    %p350 = pneg %p349
    // Predicated region
    $region9: #{enc_mtan_gru_forward.2} parent=5 // pred_check
      _
    $region10: #{enc_mtan_gru_forward.2} parent=5 // pred_check_branch
      %352 = sbr.rel (%p349) target = $region12
    $region11: #{enc_mtan_gru_forward.2} parent=5 // pred_region
      %s353 = ssub.s32 %s20, 1
      // Predicated region
      $region13: #{enc_mtan_gru_forward.2} parent=11 // pred_check
        %p354 = pneg %p67
      $region14: #{enc_mtan_gru_forward.2} parent=11 // pred_check_branch
        %356 = sbr.rel (%p354) target = $region16
      $region15: #{enc_mtan_gru_forward.2} parent=11 // pred_region
        _
      $region16: #{enc_mtan_gru_forward.2} parent=11 // pred_fallthru
        _
      // Predicated region
      $region17: #{enc_mtan_gru_forward.2} parent=11 // pred_check
        %p357 = pneg %p140
      $region18: #{enc_mtan_gru_forward.2} parent=11 // pred_check_branch
        %359 = sbr.rel (%p357) target = $region20
      $region19: #{enc_mtan_gru_forward.2} parent=11 // pred_region
        _
      $region20: #{enc_mtan_gru_forward.2} parent=11 // pred_fallthru
        _
      // Predicated region
      $region21: #{enc_mtan_gru_forward.2} parent=11 // pred_check
        %p360 = pneg %p161
      $region22: #{enc_mtan_gru_forward.2} parent=11 // pred_check_branch
        %362 = sbr.rel (%p360) target = $region24
      $region23: #{enc_mtan_gru_forward.2} parent=11 // pred_region
        _
      $region24: #{enc_mtan_gru_forward.2} parent=11 // pred_fallthru
        _
      // Predicated region
      $region25: #{enc_mtan_gru_forward.2} parent=11 // pred_check
        %p363 = pneg %p182
      $region26: #{enc_mtan_gru_forward.2} parent=11 // pred_check_branch
        %365 = sbr.rel (%p363) target = $region28
      $region27: #{enc_mtan_gru_forward.2} parent=11 // pred_region
        _
      $region28: #{enc_mtan_gru_forward.2} parent=11 // pred_fallthru
        _
      // Predicated region
      $region29: #{enc_mtan_gru_forward.2} parent=11 // pred_check
        %p366 = pneg %p203
      $region30: #{enc_mtan_gru_forward.2} parent=11 // pred_check_branch
        %368 = sbr.rel (%p366) target = $region32
      $region31: #{enc_mtan_gru_forward.2} parent=11 // pred_region
        _
      $region32: #{enc_mtan_gru_forward.2} parent=11 // pred_fallthru
        _
      // Predicated region
      $region33: #{enc_mtan_gru_forward.2} parent=11 // pred_check
        %p369 = pneg %p224
      $region34: #{enc_mtan_gru_forward.2} parent=11 // pred_check_branch
        %371 = sbr.rel (%p369) target = $region36
      $region35: #{enc_mtan_gru_forward.2} parent=11 // pred_region
        _
      $region36: #{enc_mtan_gru_forward.2} parent=11 // pred_fallthru
        _
      // Predicated region
      $region37: #{enc_mtan_gru_forward.2} parent=11 // pred_check
        %p372 = pneg %p245
      $region38: #{enc_mtan_gru_forward.2} parent=11 // pred_check_branch
        %374 = sbr.rel (%p372) target = $region40
      $region39: #{enc_mtan_gru_forward.2} parent=11 // pred_region
        _
      $region40: #{enc_mtan_gru_forward.2} parent=11 // pred_fallthru
        _
      // Predicated region
      $region41: #{enc_mtan_gru_forward.2} parent=11 // pred_check
        %p375 = pneg %p266
      $region42: #{enc_mtan_gru_forward.2} parent=11 // pred_check_branch
        %377 = sbr.rel (%p375) target = $region44
      $region43: #{enc_mtan_gru_forward.2} parent=11 // pred_region
        _
      $region44: #{enc_mtan_gru_forward.2} parent=11 // pred_fallthru
        _
      // Predicated region
      $region45: #{enc_mtan_gru_forward.2} parent=11 // pred_check
        %p378 = pneg %p287
      $region46: #{enc_mtan_gru_forward.2} parent=11 // pred_check_branch
        %380 = sbr.rel (%p378) target = $region48
      $region47: #{enc_mtan_gru_forward.2} parent=11 // pred_region
        _
      $region48: #{enc_mtan_gru_forward.2} parent=11 // pred_fallthru
        _
    $region12: #{enc_mtan_gru_forward.2} parent=5 // pred_fallthru
      _
    %p381 = scmp.lt.s32.totalorder %s20, 2
    // Predicated region
    $region49: #{enc_mtan_gru_forward.2} parent=5 // pred_check
      %p382 = pneg %p381
    $region50: #{enc_mtan_gru_forward.2} parent=5 // pred_check_branch
      %384 = sbr.rel (%p382) target = $region52
    $region51: #{enc_mtan_gru_forward.2} parent=5 // pred_region
      // Predicated region
      $region53: #{enc_mtan_gru_forward.2} parent=51 // pred_check
        %p385 = pneg %p40
      $region54: #{enc_mtan_gru_forward.2} parent=51 // pred_check_branch
        %387 = sbr.rel (%p385) target = $region56
      $region55: #{enc_mtan_gru_forward.2} parent=51 // pred_region
        %p388 = scmp.lt.s32.totalorder %s20, 1
        %s389 = scalar_select %p388, %s20, 1
        %s390 = smul.addr %s389, 8
        %s391 = scalar_lea.vmem %s0, %s390
      $region56: #{enc_mtan_gru_forward.2} parent=51 // pred_fallthru
        _
      // Predicated region
      $region57: #{enc_mtan_gru_forward.2} parent=51 // pred_check
        %p392 = pneg %p87
      $region58: #{enc_mtan_gru_forward.2} parent=51 // pred_check_branch
        %394 = sbr.rel (%p392) target = $region60
      $region59: #{enc_mtan_gru_forward.2} parent=51 // pred_region
        %p395 = scmp.lt.s32.totalorder %s20, 1
        %s396 = scalar_select %p395, %s20, 1
        %s397 = smul.addr %s396, 4
        %s398 = scalar_lea.vmem %s2, %s397
      $region60: #{enc_mtan_gru_forward.2} parent=51 // pred_fallthru
        _
      // Predicated region
      $region61: #{enc_mtan_gru_forward.2} parent=51 // pred_check
        %p399 = pneg %p113
      $region62: #{enc_mtan_gru_forward.2} parent=51 // pred_check_branch
        %401 = sbr.rel (%p399) target = $region64
      $region63: #{enc_mtan_gru_forward.2} parent=51 // pred_region
        %p402 = scmp.lt.s32.totalorder %s20, 1
        %s403 = scalar_select %p402, %s20, 1
        %s404 = smul.addr %s403, 4
        %s405 = scalar_lea.vmem %s3, %s404
      $region64: #{enc_mtan_gru_forward.2} parent=51 // pred_fallthru
        _
    $region52: #{enc_mtan_gru_forward.2} parent=5 // pred_fallthru
      _
    %p406 = scmp.le.s32.totalorder 1, %s20
    %p407 = scmp.lt.s32.totalorder %s20, 3
    %p408 = pnand %p406, %p407
    %p409 = pneg %p408
    // Predicated region
    $region65: #{enc_mtan_gru_forward.2} parent=5 // pred_check
      _
    $region66: #{enc_mtan_gru_forward.2} parent=5 // pred_check_branch
      %411 = sbr.rel (%p408) target = $region68
    $region67: #{enc_mtan_gru_forward.2} parent=5 // pred_region
      %s412 = ssub.s32 %s20, 1
      %p413 = scmp.lt.s32.totalorder %s25, 1
      %s414 = scalar_select %p413, %s25, 1
      %s415 = smul.addr %s414, 8
      %s416 = scalar_lea.vmem %s0, %s415
      %p417 = pneg %p46
      %p418 = pneg %p43
      %p419 = pneg %p67
      %p420 = pneg %p64
      %p421 = scmp.lt.s32.totalorder %s25, 1
      %s422 = scalar_select %p421, %s25, 1
      %s423 = smul.addr %s422, 4
      %s424 = scalar_lea.vmem %s2, %s423
      %p425 = pneg %p93
      %p426 = pneg %p90
      %p427 = scmp.lt.s32.totalorder %s25, 1
      %s428 = scalar_select %p427, %s25, 1
      %s429 = smul.addr %s428, 4
      %s430 = scalar_lea.vmem %s3, %s429
      %p431 = pneg %p119
      %p432 = pneg %p116
      %p433 = pneg %p140
      %p434 = pneg %p137
      %p435 = pneg %p161
      %p436 = pneg %p158
      %p437 = pneg %p182
      %p438 = pneg %p179
      %p439 = pneg %p203
      %p440 = pneg %p200
      %p441 = pneg %p224
      %p442 = pneg %p221
      %p443 = pneg %p245
      %p444 = pneg %p242
      %p445 = pneg %p266
      %p446 = pneg %p263
      %p447 = pneg %p287
      %p448 = pneg %p284
      %p449 = pneg %p313
      %p450 = pneg %p310
      %p451 = scmp.lt.s32.totalorder %s25, 1
      %s452 = scalar_select %p451, %s25, 1
      %s453 = smul.addr %s452, 12
      %s454 = smul.addr %s453, 8
      %s455 = scalar_lea.vmem %s12, %s454
      %p456 = pneg %p339
      %p457 = pneg %p336
      %p458 = scmp.lt.s32.totalorder %s25, 1
      %s459 = scalar_select %p458, %s25, 1
      %s460 = smul.addr %s459, 12
      %s461 = smul.addr %s460, 8
      %s462 = scalar_lea.vmem %s13, %s461
      %p463 = scmp.lt.s32.totalorder %s25, 1
      %s464 = scalar_select %p463, %s25, 1
      %s465 = smul.addr %s464, 8
      %s466 = scalar_lea.vmem %s0, %s465
      %p467 = scmp.lt.s32.totalorder %s25, 1
      %s468 = scalar_select %p467, %s25, 1
      %s469 = smul.addr %s468, 4
      %s470 = scalar_lea.vmem %s2, %s469
      %p471 = scmp.lt.s32.totalorder %s25, 1
      %s472 = scalar_select %p471, %s25, 1
      %s473 = smul.addr %s472, 4
      %s474 = scalar_lea.vmem %s3, %s473
      %p475 = scmp.lt.s32.totalorder %s25, 1
      %s476 = scalar_select %p475, %s25, 1
      %s477 = smul.addr %s476, 12
      %s478 = smul.addr %s477, 8
      %s479 = scalar_lea.vmem %s12, %s478
      %p480 = scmp.lt.s32.totalorder %s25, 1
      %s481 = scalar_select %p480, %s25, 1
      %s482 = smul.addr %s481, 12
      %s483 = smul.addr %s482, 8
      %s484 = scalar_lea.vmem %s13, %s483
      %v485 = vld [vmem:[%s466] sm:$0xff]
      %v486 = vld [vmem:[%s1] sm:$0xff]
      %v487 = vld [vmem:[%s1 + $0x8] sm:$0xff]
      %v488 = vld [vmem:[%s4] sm:$0x1]
      %490 = vset.pattern.permute.xlu0 0
      %491 = vperm.xlu0 %490, %v485
      %v492 = vpop.permute.xlu0 %491
      %v495 = vlaneseq
      %v496 = vshrl.u32 %v495, 7
      %v497 = vsub.s32 0, %v496
      %v498 = vrot.slane %v488, %v497
      %v500 = vmul.f32 %v492, %v498
      %v501 = vld [vmem:[%s5] sm:$0x1]
      %v503 = vlaneseq
      %v504 = vshrl.u32 %v503, 7
      %v505 = vsub.s32 0, %v504
      %v506 = vrot.slane %v501, %v505
      %v508 = vadd.f32 %v500, %v506
      %v509 = vlaneseq
      %v510 = vand.u32 %v509, 127
      %vm511 = vcmp.eq.s32.totalorder %v510, 0
      %v512 = vand.u32 2147483647, %v508
      %vm513 = vcmp.le.f32.partialorder %v512, 0.7853982
      %vm514 = vcmp.lt.s32.totalorder %v508, 0
      %v515 = vand.u32 %v508, 2139095040
      %v516 = vshrl.u32 %v515, 23
      %v517 = vsub.s32 %v516, 127
      %v518 = vand.u32 2147483647, %v508
      %v519 = vand.u32 %v518, 8388607
      %v520 = vor.u32 %v519, 8388608
      %v521 = vsub.s32 0, %v520
      %v522 = vadd.s32 %v517, 1
      %vm523 = vcmp.gt.s32.totalorder %v522, 0
      %v524 = vsel %vm523, %v522, 0
      %v525 = vshrl.u32 %v524, 5
      %v526 = vand.u32 %v524, 31
      %v527 = vsub.s32 32, %v526
      %v528 = vshrl.u32 683565275, %v527
      %v529 = vshll.u32 683565275, %v526
      %v530 = vshrl.u32 2475754826, %v527
      %v531 = vor.u32 %v529, %v530
      %v532 = vshll.u32 2475754826, %v526
      %v533 = vshrl.u32 2131351028, %v527
      %v534 = vor.u32 %v532, %v533
      %v535 = vshll.u32 2131351028, %v526
      %v536 = vshrl.u32 2102212464, %v527
      %v537 = vor.u32 %v535, %v536
      %v538 = vshll.u32 2102212464, %v526
      %v539 = vshrl.u32 920167782, %v527
      %v540 = vor.u32 %v538, %v539
      %v541 = vshll.u32 920167782, %v526
      %v542 = vshrl.u32 1326507024, %v527
      %v543 = vor.u32 %v541, %v542
      %vm544 = vcmp.lt.s32.totalorder %v525, 1
      %vm545 = vcmp.lt.s32.totalorder %v525, 2
      %vm546 = vcmp.lt.s32.totalorder %v525, 3
      %vm547 = vcmp.lt.s32.totalorder %v525, 4
      %v548 = vsel %vm544, %v528, %v531
      %v549 = vsel %vm547, %v537, 2102212464
      %v550 = vsel %vm546, %v534, %v549
      %v551 = vsel %vm545, %v548, %v550
      %v552 = vsel %vm544, %v531, %v534
      %v553 = vsel %vm547, %v540, 920167782
      %v554 = vsel %vm546, %v537, %v553
      %v555 = vsel %vm545, %v552, %v554
      %v556 = vsel %vm544, %v534, %v537
      %v557 = vsel %vm547, %v543, 1326507024
      %v558 = vsel %vm546, %v540, %v557
      %v559 = vsel %vm545, %v556, %v558
      %v560 = vshll.u32 %v520, 8
      %v561 = vmul.u32.u64.compose %v560, %v559
      %v562 = vextract.low.u32 %v561
      %v563 = vextract.high.u32 %v561
      %v564 = vmul.u32.u64.compose %v560, %v555
      %v565 = vextract.low.u32 %v564
      %v566 = vextract.high.u32 %v564
      %v567 = vmul.u32 %v560, %v551
      %v568 = vadd.s32 %v563, %v565
      %vm569 = vc.u32 %v563, %v565
      %v570 = vadd.s32 %v566, 1
      %v571 = vsel %vm569, %v570, %v566
      %v572 = vadd.s32 %v567, %v571
      %v573 = vadd.s32 %v572, 536870912
      %v574 = vshrl.u32 %v573, 30
      %v575 = vshll.u32 %v574, 30
      %v576 = vsub.s32 %v572, %v575
      %vm577 = vcmp.lt.s32.totalorder %v576, 0
      %v578 = vsub.s32 0, %v576
      %v579 = vsel %vm577, %v578, %v576
      %v580 = vclz %v579
      %v581 = vsub.s32 %v580, 2
      %vm582 = vcmp.gt.s32.totalorder 0, %v581
      %v583 = vsel %vm582, 0, %v581
      %v584 = vsub.s32 32, %v583
      %v585 = vshll.u32 %v576, %v583
      %v586 = vshrl.u32 %v568, %v584
      %v587 = vor.u32 %v585, %v586
      %v588 = vsub.s32 4294967266, %v583
      %v589 = vadd.s32 %v588, 127
      %v590 = vshll.u32 %v589, 23
      %v591 = vor.u32 4788187, %v590
      %v592 = vand.u32 2147483647, %v591
      %v594 = vcvt.s32.f32 %v587
      %v595 = vmul.f32 %v594, %v592
      %v596 = vxor.u32 %v595, 2147483648
      %v597 = vsel %vm514, %v596, %v595
      %v598 = vsub.s32 4, %v574
      %v599 = vsel %vm514, %v598, %v574
      %v600 = vsel %vm513, %v508, %v597
      %v601 = vsel %vm513, 0, %v599
      %v602 = vcosq.f32.pop %v600
      %v603 = vsinq.f32.pop %v600
      %vm604 = vweird.f32 %v508
      %v605 = vadd.s32 %v601, 3
      %v606 = vand.u32 %v605, 3
      %vm607 = vcmp.lt.s32.totalorder %v606, 2
      %vm608 = vcmp.eq.s32.totalorder %v606, 0
      %v609 = vxor.u32 %v603, 2147483648
      %v610 = vsel %vm608, %v602, %v609
      %vm611 = vcmp.eq.s32.totalorder %v606, 2
      %v612 = vxor.u32 %v602, 2147483648
      %v613 = vsel %vm611, %v612, %v603
      %v614 = vsel %vm607, %v610, %v613
      %v615 = vsel %vm604, nan, %v614
      %v616 = vsel %vm511, %v508, %v615
      %618 = vset.pattern.permute.xlu0 0
      %619 = vperm.xlu0 %618, %v486
      %v620 = vpop.permute.xlu0 %619
      %623 = vset.pattern.permute.xlu0 0
      %624 = vperm.xlu0 %623, %v487
      %v625 = vpop.permute.xlu0 %624
      %v627 = vmul.f32 %v620, %v498
      %v628 = vmul.f32 %v625, %v498
      %v629 = vadd.f32 %v627, %v506
      %v630 = vadd.f32 %v628, %v506
      %v631 = vand.u32 2147483647, %v629
      %vm632 = vcmp.le.f32.partialorder %v631, 0.7853982
      %vm633 = vcmp.lt.s32.totalorder %v629, 0
      %v634 = vand.u32 %v629, 2139095040
      %v635 = vshrl.u32 %v634, 23
      %v636 = vsub.s32 %v635, 127
      %v637 = vand.u32 2147483647, %v629
      %v638 = vand.u32 %v637, 8388607
      %v639 = vor.u32 %v638, 8388608
      %v640 = vsub.s32 0, %v639
      %v641 = vadd.s32 %v636, 1
      %vm642 = vcmp.gt.s32.totalorder %v641, 0
      %v643 = vsel %vm642, %v641, 0
      %v644 = vshrl.u32 %v643, 5
      %v645 = vand.u32 %v643, 31
      %v646 = vsub.s32 32, %v645
      %v647 = vshrl.u32 683565275, %v646
      %v648 = vshll.u32 683565275, %v645
      %v649 = vshrl.u32 2475754826, %v646
      %v650 = vor.u32 %v648, %v649
      %v651 = vshll.u32 2475754826, %v645
      %v652 = vshrl.u32 2131351028, %v646
      %v653 = vor.u32 %v651, %v652
      %v654 = vshll.u32 2131351028, %v645
      %v655 = vshrl.u32 2102212464, %v646
      %v656 = vor.u32 %v654, %v655
      %v657 = vshll.u32 2102212464, %v645
      %v658 = vshrl.u32 920167782, %v646
      %v659 = vor.u32 %v657, %v658
      %v660 = vshll.u32 920167782, %v645
      %v661 = vshrl.u32 1326507024, %v646
      %v662 = vor.u32 %v660, %v661
      %vm663 = vcmp.lt.s32.totalorder %v644, 1
      %vm664 = vcmp.lt.s32.totalorder %v644, 2
      %vm665 = vcmp.lt.s32.totalorder %v644, 3
      %vm666 = vcmp.lt.s32.totalorder %v644, 4
      %v667 = vsel %vm663, %v647, %v650
      %v668 = vsel %vm666, %v656, 2102212464
      %v669 = vsel %vm665, %v653, %v668
      %v670 = vsel %vm664, %v667, %v669
      %v671 = vsel %vm663, %v650, %v653
      %v672 = vsel %vm666, %v659, 920167782
      %v673 = vsel %vm665, %v656, %v672
      %v674 = vsel %vm664, %v671, %v673
      %v675 = vsel %vm663, %v653, %v656
      %v676 = vsel %vm666, %v662, 1326507024
      %v677 = vsel %vm665, %v659, %v676
      %v678 = vsel %vm664, %v675, %v677
      %v679 = vshll.u32 %v639, 8
      %v680 = vmul.u32.u64.compose %v679, %v678
      %v681 = vextract.low.u32 %v680
      %v682 = vextract.high.u32 %v680
      %v683 = vmul.u32.u64.compose %v679, %v674
      %v684 = vextract.low.u32 %v683
      %v685 = vextract.high.u32 %v683
      %v686 = vmul.u32 %v679, %v670
      %v687 = vadd.s32 %v682, %v684
      %vm688 = vc.u32 %v682, %v684
      %v689 = vadd.s32 %v685, 1
      %v690 = vsel %vm688, %v689, %v685
      %v691 = vadd.s32 %v686, %v690
      %v692 = vadd.s32 %v691, 536870912
      %v693 = vshrl.u32 %v692, 30
      %v694 = vshll.u32 %v693, 30
      %v695 = vsub.s32 %v691, %v694
      %vm696 = vcmp.lt.s32.totalorder %v695, 0
      %v697 = vsub.s32 0, %v695
      %v698 = vsel %vm696, %v697, %v695
      %v699 = vclz %v698
      %v700 = vsub.s32 %v699, 2
      %vm701 = vcmp.gt.s32.totalorder 0, %v700
      %v702 = vsel %vm701, 0, %v700
      %v703 = vsub.s32 32, %v702
      %v704 = vshll.u32 %v695, %v702
      %v705 = vshrl.u32 %v687, %v703
      %v706 = vor.u32 %v704, %v705
      %v707 = vsub.s32 4294967266, %v702
      %v708 = vadd.s32 %v707, 127
      %v709 = vshll.u32 %v708, 23
      %v710 = vor.u32 4788187, %v709
      %v711 = vand.u32 2147483647, %v710
      %v713 = vcvt.s32.f32 %v706
      %v714 = vmul.f32 %v713, %v711
      %v715 = vxor.u32 %v714, 2147483648
      %v716 = vsel %vm633, %v715, %v714
      %v717 = vsub.s32 4, %v693
      %v718 = vsel %vm633, %v717, %v693
      %v719 = vsel %vm632, %v629, %v716
      %v720 = vsel %vm632, 0, %v718
      %v721 = vcosq.f32.pop %v719
      %v722 = vsinq.f32.pop %v719
      %vm723 = vweird.f32 %v629
      %v724 = vadd.s32 %v720, 3
      %v725 = vand.u32 %v724, 3
      %vm726 = vcmp.lt.s32.totalorder %v725, 2
      %vm727 = vcmp.eq.s32.totalorder %v725, 0
      %v728 = vxor.u32 %v722, 2147483648
      %v729 = vsel %vm727, %v721, %v728
      %vm730 = vcmp.eq.s32.totalorder %v725, 2
      %v731 = vxor.u32 %v721, 2147483648
      %v732 = vsel %vm730, %v731, %v722
      %v733 = vsel %vm726, %v729, %v732
      %v734 = vsel %vm723, nan, %v733
      %v735 = vand.u32 2147483647, %v630
      %vm736 = vcmp.le.f32.partialorder %v735, 0.7853982
      %vm737 = vcmp.lt.s32.totalorder %v630, 0
      %v738 = vand.u32 %v630, 2139095040
      %v739 = vshrl.u32 %v738, 23
      %v740 = vsub.s32 %v739, 127
      %v741 = vand.u32 2147483647, %v630
      %v742 = vand.u32 %v741, 8388607
      %v743 = vor.u32 %v742, 8388608
      %v744 = vsub.s32 0, %v743
      %v745 = vadd.s32 %v740, 1
      %vm746 = vcmp.gt.s32.totalorder %v745, 0
      %v747 = vsel %vm746, %v745, 0
      %v748 = vshrl.u32 %v747, 5
      %v749 = vand.u32 %v747, 31
      %v750 = vsub.s32 32, %v749
      %v751 = vshrl.u32 683565275, %v750
      %v752 = vshll.u32 683565275, %v749
      %v753 = vshrl.u32 2475754826, %v750
      %v754 = vor.u32 %v752, %v753
      %v755 = vshll.u32 2475754826, %v749
      %v756 = vshrl.u32 2131351028, %v750
      %v757 = vor.u32 %v755, %v756
      %v758 = vshll.u32 2131351028, %v749
      %v759 = vshrl.u32 2102212464, %v750
      %v760 = vor.u32 %v758, %v759
      %v761 = vshll.u32 2102212464, %v749
      %v762 = vshrl.u32 920167782, %v750
      %v763 = vor.u32 %v761, %v762
      %v764 = vshll.u32 920167782, %v749
      %v765 = vshrl.u32 1326507024, %v750
      %v766 = vor.u32 %v764, %v765
      %vm767 = vcmp.lt.s32.totalorder %v748, 1
      %vm768 = vcmp.lt.s32.totalorder %v748, 2
      %vm769 = vcmp.lt.s32.totalorder %v748, 3
      %vm770 = vcmp.lt.s32.totalorder %v748, 4
      %v771 = vsel %vm767, %v751, %v754
      %v772 = vsel %vm770, %v760, 2102212464
      %v773 = vsel %vm769, %v757, %v772
      %v774 = vsel %vm768, %v771, %v773
      %v775 = vsel %vm767, %v754, %v757
      %v776 = vsel %vm770, %v763, 920167782
      %v777 = vsel %vm769, %v760, %v776
      %v778 = vsel %vm768, %v775, %v777
      %v779 = vsel %vm767, %v757, %v760
      %v780 = vsel %vm770, %v766, 1326507024
      %v781 = vsel %vm769, %v763, %v780
      %v782 = vsel %vm768, %v779, %v781
      %v783 = vshll.u32 %v743, 8
      %v784 = vmul.u32.u64.compose %v783, %v782
      %v785 = vextract.low.u32 %v784
      %v786 = vextract.high.u32 %v784
      %v787 = vmul.u32.u64.compose %v783, %v778
      %v788 = vextract.low.u32 %v787
      %v789 = vextract.high.u32 %v787
      %v790 = vmul.u32 %v783, %v774
      %v791 = vadd.s32 %v786, %v788
      %vm792 = vc.u32 %v786, %v788
      %v793 = vadd.s32 %v789, 1
      %v794 = vsel %vm792, %v793, %v789
      %v795 = vadd.s32 %v790, %v794
      %v796 = vadd.s32 %v795, 536870912
      %v797 = vshrl.u32 %v796, 30
      %v798 = vshll.u32 %v797, 30
      %v799 = vsub.s32 %v795, %v798
      %vm800 = vcmp.lt.s32.totalorder %v799, 0
      %v801 = vsub.s32 0, %v799
      %v802 = vsel %vm800, %v801, %v799
      %v803 = vclz %v802
      %v804 = vsub.s32 %v803, 2
      %vm805 = vcmp.gt.s32.totalorder 0, %v804
      %v806 = vsel %vm805, 0, %v804
      %v807 = vsub.s32 32, %v806
      %v808 = vshll.u32 %v799, %v806
      %v809 = vshrl.u32 %v791, %v807
      %v810 = vor.u32 %v808, %v809
      %v811 = vsub.s32 4294967266, %v806
      %v812 = vadd.s32 %v811, 127
      %v813 = vshll.u32 %v812, 23
      %v814 = vor.u32 4788187, %v813
      %v815 = vand.u32 2147483647, %v814
      %v817 = vcvt.s32.f32 %v810
      %v818 = vmul.f32 %v817, %v815
      %v819 = vxor.u32 %v818, 2147483648
      %v820 = vsel %vm737, %v819, %v818
      %v821 = vsub.s32 4, %v797
      %v822 = vsel %vm737, %v821, %v797
      %v823 = vsel %vm736, %v630, %v820
      %v824 = vsel %vm736, 0, %v822
      %v825 = vcosq.f32.pop %v823
      %v826 = vsinq.f32.pop %v823
      %vm827 = vweird.f32 %v630
      %v828 = vadd.s32 %v824, 3
      %v829 = vand.u32 %v828, 3
      %vm830 = vcmp.lt.s32.totalorder %v829, 2
      %vm831 = vcmp.eq.s32.totalorder %v829, 0
      %v832 = vxor.u32 %v826, 2147483648
      %v833 = vsel %vm831, %v825, %v832
      %vm834 = vcmp.eq.s32.totalorder %v829, 2
      %v835 = vxor.u32 %v825, 2147483648
      %v836 = vsel %vm834, %v835, %v826
      %v837 = vsel %vm830, %v833, %v836
      %v838 = vsel %vm827, nan, %v837
      %v839 = vsel %vm511, %v629, %v734
      %v840 = vsel %vm511, %v630, %v838
      %v841 = vld [vmem:[%s8] sm:$0xff]
      %v842 = vld [vmem:[%s8 + $0x8] sm:$0xff]
      %v843 = vld [vmem:[%s9] sm:$0x1]
      %v845 = vlaneseq
      %v846 = vshrl.u32 %v845, 7
      %v847 = vsub.s32 0, %v846
      %v848 = vrot.slane %v843, %v847
      %vm850 = vcmask 130048
      %v852 = vsel %vm850, %v616, 0
      %854 = vmatprep.subr.mxu0 0.0
      %855 = vmatpush1.msra.mxu0 %v841
      %856 = vmatprep.subr.mxu0 0.0
      %857 = vmatpush1.msra.mxu0 %v842
      %858 = vmatprep.subr.mxu0 0.0
      %859 = vmatpush1.msra.mxu0 0.0
      %860 = vmatprep.subr.mxu0 0.0
      %861 = vmatpush1.msra.mxu0 0.0
      %862 = vmatprep.subr.mxu0 0.0
      %863 = vmatpush1.msra.mxu0 0.0
      %864 = vmatprep.subr.mxu0 0.0
      %865 = vmatpush1.msra.mxu0 0.0
      %866 = vmatprep.subr.mxu0 0.0
      %867 = vmatpush1.msra.mxu0 0.0
      %868 = vmatprep.subr.mxu0 0.0
      %869 = vmatpush1.msra.mxu0 0.0
      %870 = vmatprep.subr.mxu0 0.0
      %871 = vmatpush1.msra.mxu0 0.0
      %872 = vmatprep.subr.mxu0 0.0
      %873 = vmatpush1.msra.mxu0 0.0
      %874 = vmatprep.subr.mxu0 0.0
      %875 = vmatpush1.msra.mxu0 0.0
      %876 = vmatprep.subr.mxu0 0.0
      %877 = vmatpush1.msra.mxu0 0.0
      %878 = vmatprep.subr.mxu0 0.0
      %879 = vmatpush1.msra.mxu0 0.0
      %880 = vmatprep.subr.mxu0 0.0
      %881 = vmatpush1.msra.mxu0 0.0
      %882 = vmatprep.subr.mxu0 0.0
      %883 = vmatpush1.msra.mxu0 0.0
      %884 = vmatprep.subr.mxu0 0.0
      %885 = vmatpush1.msra.mxu0 0.0
      %886 = vmatprep.subr.mxu0 0.0
      %887 = vmatpush1.msra.mxu0 0.0
      %888 = vmatprep.subr.mxu0 0.0
      %889 = vmatpush1.msra.mxu0 0.0
      %890 = vmatprep.subr.mxu0 0.0
      %891 = vmatpush1.msra.mxu0 0.0
      %892 = vmatprep.subr.mxu0 0.0
      %893 = vmatpush1.msra.mxu0 0.0
      %894 = vmatprep.subr.mxu0 0.0
      %895 = vmatpush1.msra.mxu0 0.0
      %896 = vmatprep.subr.mxu0 0.0
      %897 = vmatpush1.msra.mxu0 0.0
      %898 = vmatprep.subr.mxu0 0.0
      %899 = vmatpush1.msra.mxu0 0.0
      %900 = vmatprep.subr.mxu0 0.0
      %901 = vmatpush1.msra.mxu0 0.0
      %902 = vmatprep.subr.mxu0 0.0
      %903 = vmatpush1.msra.mxu0 0.0
      %904 = vmatprep.subr.mxu0 0.0
      %905 = vmatpush1.msra.mxu0 0.0
      %906 = vmatprep.subr.mxu0 0.0
      %907 = vmatpush1.msra.mxu0 0.0
      %908 = vmatprep.subr.mxu0 0.0
      %909 = vmatpush1.msra.mxu0 0.0
      %910 = vmatprep.subr.mxu0 0.0
      %911 = vmatpush1.msra.mxu0 0.0
      %912 = vmatprep.subr.mxu0 0.0
      %913 = vmatpush1.msra.mxu0 0.0
      %914 = vmatprep.subr.mxu0 0.0
      %915 = vmatpush1.msra.mxu0 0.0
      %916 = vmatprep.subr.mxu0 0.0
      %917 = vmatpush1.msra.mxu0 0.0
      %918 = vmatprep.mubr.f32.mxu0 0.0
      %919 = vmatmul.mubr.f32.gmra.mrb[0].mxu0 %v852
      %v920 = vpop.f32.mrb[0].mxu0
      %v921 = vadd.f32 %v848, %v920
      %v922 = vpop.f32.mrb[0].mxu0
      %923 = vdwg.mxu0
      %v924 = vld [vmem:[%s6] sm:$0xff]
      %v925 = vld [vmem:[%s6 + $0x8] sm:$0xff]
      %v926 = vld [vmem:[%s7] sm:$0x1]
      %v928 = vlaneseq
      %v929 = vshrl.u32 %v928, 7
      %v930 = vsub.s32 0, %v929
      %v931 = vrot.slane %v926, %v930
      %v934 = vsel %vm850, %v839, 0
      %v937 = vsel %vm850, %v840, 0
      %939 = vmatprep.subr.mxu0 0.0
      %940 = vmatpush1.msra.mxu0 %v924
      %941 = vmatprep.subr.mxu0 0.0
      %942 = vmatpush1.msra.mxu0 %v925
      %943 = vmatprep.subr.mxu0 0.0
      %944 = vmatpush1.msra.mxu0 0.0
      %945 = vmatprep.subr.mxu0 0.0
      %946 = vmatpush1.msra.mxu0 0.0
      %947 = vmatprep.subr.mxu0 0.0
      %948 = vmatpush1.msra.mxu0 0.0
      %949 = vmatprep.subr.mxu0 0.0
      %950 = vmatpush1.msra.mxu0 0.0
      %951 = vmatprep.subr.mxu0 0.0
      %952 = vmatpush1.msra.mxu0 0.0
      %953 = vmatprep.subr.mxu0 0.0
      %954 = vmatpush1.msra.mxu0 0.0
      %955 = vmatprep.subr.mxu0 0.0
      %956 = vmatpush1.msra.mxu0 0.0
      %957 = vmatprep.subr.mxu0 0.0
      %958 = vmatpush1.msra.mxu0 0.0
      %959 = vmatprep.subr.mxu0 0.0
      %960 = vmatpush1.msra.mxu0 0.0
      %961 = vmatprep.subr.mxu0 0.0
      %962 = vmatpush1.msra.mxu0 0.0
      %963 = vmatprep.subr.mxu0 0.0
      %964 = vmatpush1.msra.mxu0 0.0
      %965 = vmatprep.subr.mxu0 0.0
      %966 = vmatpush1.msra.mxu0 0.0
      %967 = vmatprep.subr.mxu0 0.0
      %968 = vmatpush1.msra.mxu0 0.0
      %969 = vmatprep.subr.mxu0 0.0
      %970 = vmatpush1.msra.mxu0 0.0
      %971 = vmatprep.subr.mxu0 0.0
      %972 = vmatpush1.msra.mxu0 0.0
      %973 = vmatprep.subr.mxu0 0.0
      %974 = vmatpush1.msra.mxu0 0.0
      %975 = vmatprep.subr.mxu0 0.0
      %976 = vmatpush1.msra.mxu0 0.0
      %977 = vmatprep.subr.mxu0 0.0
      %978 = vmatpush1.msra.mxu0 0.0
      %979 = vmatprep.subr.mxu0 0.0
      %980 = vmatpush1.msra.mxu0 0.0
      %981 = vmatprep.subr.mxu0 0.0
      %982 = vmatpush1.msra.mxu0 0.0
      %983 = vmatprep.subr.mxu0 0.0
      %984 = vmatpush1.msra.mxu0 0.0
      %985 = vmatprep.subr.mxu0 0.0
      %986 = vmatpush1.msra.mxu0 0.0
      %987 = vmatprep.subr.mxu0 0.0
      %988 = vmatpush1.msra.mxu0 0.0
      %989 = vmatprep.subr.mxu0 0.0
      %990 = vmatpush1.msra.mxu0 0.0
      %991 = vmatprep.subr.mxu0 0.0
      %992 = vmatpush1.msra.mxu0 0.0
      %993 = vmatprep.subr.mxu0 0.0
      %994 = vmatpush1.msra.mxu0 0.0
      %995 = vmatprep.subr.mxu0 0.0
      %996 = vmatpush1.msra.mxu0 0.0
      %997 = vmatprep.subr.mxu0 0.0
      %998 = vmatpush1.msra.mxu0 0.0
      %999 = vmatprep.subr.mxu0 0.0
      %1000 = vmatpush1.msra.mxu0 0.0
      %1001 = vmatprep.subr.mxu0 0.0
      %1002 = vmatpush1.msra.mxu0 0.0
      %1003 = vmatprep.mubr.f32.mxu0 0.0
      %1004 = vmatmul.mubr.f32.gmra.mrb[0].mxu0 %v934
      %v1005 = vpop.f32.mrb[0].mxu0
      %v1006 = vadd.f32 %v931, %v1005
      %v1007 = vpop.f32.mrb[0].mxu0
      %1008 = vmatprep.mubr.f32.mxu0 0.0
      %1009 = vmatmul.mubr.f32.gmra.mrb[0].mxu0 %v937
      %v1010 = vpop.f32.mrb[0].mxu0
      %v1011 = vadd.f32 %v931, %v1010
      %v1012 = vpop.f32.mrb[0].mxu0
      %1013 = vdwg.mxu0
      %v1014 = vld [vmem:[%s470] sm:$0x1]
      %v1015 = vld [vmem:[%s470 + $0x1] sm:$0x1]
      %v1016 = vld [vmem:[%s470 + $0x2] sm:$0x1]
      %v1017 = vld [vmem:[%s470 + $0x3] sm:$0x1]
      %v1018 = vld [vmem:[%s474] sm:$0x1]
      %v1019 = vld [vmem:[%s474 + $0x1] sm:$0x1]
      %v1020 = vld [vmem:[%s474 + $0x2] sm:$0x1]
      %v1021 = vld [vmem:[%s474 + $0x3] sm:$0x1]
      %v1023 = vsel %vm850, %v1006, 0
      %v1026 = vsel %vm850, %v1011, 0
      %v1029 = vsel %vm850, %v921, 0
      %1031 = vmatprep.subr.mxu0 0.0
      %1032 = vmatpush1.xpose.msra.mxu0 %v1029
      %1033 = vmatprep.subr.mxu0 0.0
      %1034 = vmatpush1.xpose.msra.mxu0 0.0
      %1035 = vmatprep.subr.mxu0 0.0
      %1036 = vmatpush1.xpose.msra.mxu0 0.0
      %1037 = vmatprep.subr.mxu0 0.0
      %1038 = vmatpush1.xpose.msra.mxu0 0.0
      %1039 = vmatprep.subr.mxu0 0.0
      %1040 = vmatpush1.xpose.msra.mxu0 0.0
      %1041 = vmatprep.subr.mxu0 0.0
      %1042 = vmatpush1.xpose.msra.mxu0 0.0
      %1043 = vmatprep.subr.mxu0 0.0
      %1044 = vmatpush1.xpose.msra.mxu0 0.0
      %1045 = vmatprep.subr.mxu0 0.0
      %1046 = vmatpush1.xpose.msra.mxu0 0.0
      %1047 = vmatprep.subr.mxu0 0.0
      %1048 = vmatpush1.xpose.msra.mxu0 0.0
      %1049 = vmatprep.subr.mxu0 0.0
      %1050 = vmatpush1.xpose.msra.mxu0 0.0
      %1051 = vmatprep.subr.mxu0 0.0
      %1052 = vmatpush1.xpose.msra.mxu0 0.0
      %1053 = vmatprep.subr.mxu0 0.0
      %1054 = vmatpush1.xpose.msra.mxu0 0.0
      %1055 = vmatprep.subr.mxu0 0.0
      %1056 = vmatpush1.xpose.msra.mxu0 0.0
      %1057 = vmatprep.subr.mxu0 0.0
      %1058 = vmatpush1.xpose.msra.mxu0 0.0
      %1059 = vmatprep.subr.mxu0 0.0
      %1060 = vmatpush1.xpose.msra.mxu0 0.0
      %1061 = vmatprep.subr.mxu0 0.0
      %1062 = vmatpush1.xpose.msra.mxu0 0.0
      %1063 = vmatprep.subr.mxu0 0.0
      %1064 = vmatpush1.xpose.msra.mxu0 0.0
      %1065 = vmatprep.subr.mxu0 0.0
      %1066 = vmatpush1.xpose.msra.mxu0 0.0
      %1067 = vmatprep.subr.mxu0 0.0
      %1068 = vmatpush1.xpose.msra.mxu0 0.0
      %1069 = vmatprep.subr.mxu0 0.0
      %1070 = vmatpush1.xpose.msra.mxu0 0.0
      %1071 = vmatprep.subr.mxu0 0.0
      %1072 = vmatpush1.xpose.msra.mxu0 0.0
      %1073 = vmatprep.subr.mxu0 0.0
      %1074 = vmatpush1.xpose.msra.mxu0 0.0
      %1075 = vmatprep.subr.mxu0 0.0
      %1076 = vmatpush1.xpose.msra.mxu0 0.0
      %1077 = vmatprep.subr.mxu0 0.0
      %1078 = vmatpush1.xpose.msra.mxu0 0.0
      %1079 = vmatprep.subr.mxu0 0.0
      %1080 = vmatpush1.xpose.msra.mxu0 0.0
      %1081 = vmatprep.subr.mxu0 0.0
      %1082 = vmatpush1.xpose.msra.mxu0 0.0
      %1083 = vmatprep.subr.mxu0 0.0
      %1084 = vmatpush1.xpose.msra.mxu0 0.0
      %1085 = vmatprep.subr.mxu0 0.0
      %1086 = vmatpush1.xpose.msra.mxu0 0.0
      %1087 = vmatprep.subr.mxu0 0.0
      %1088 = vmatpush1.xpose.msra.mxu0 0.0
      %1089 = vmatprep.subr.mxu0 0.0
      %1090 = vmatpush1.xpose.msra.mxu0 0.0
      %1091 = vmatprep.subr.mxu0 0.0
      %1092 = vmatpush1.xpose.msra.mxu0 0.0
      %1093 = vmatprep.subr.mxu0 0.0
      %1094 = vmatpush1.xpose.msra.mxu0 0.0
      %1095 = vmatprep.mubr.f32.mxu0 0.0
      %1096 = vmatmul.mubr.f32.gmra.mrb[0].mxu0 %v1023
      %v1097 = vpop.f32.mrb[0].mxu0
      %v1098 = vadd.f32 0.0, %v1097
      %v1099 = vpop.f32.mrb[0].mxu0
      %1100 = vmatprep.mubr.f32.mxu0 0.0
      %1101 = vmatmul.mubr.f32.gmra.mrb[0].mxu0 %v1026
      %v1102 = vpop.f32.mrb[0].mxu0
      %v1103 = vadd.f32 0.0, %v1102
      %v1104 = vpop.f32.mrb[0].mxu0
      %1105 = vdwg.mxu0
      %v1106 = vmul.f32 %v1098, 0.25
      %v1107 = vmul.f32 %v1103, 0.25
      %vm1108 = vcmp.eq.f32.partialorder %v1018, 0.0
      %vm1109 = vcmp.eq.f32.partialorder %v1019, 0.0
      %vm1110 = vcmp.eq.f32.partialorder %v1020, 0.0
      %vm1111 = vcmp.eq.f32.partialorder %v1021, 0.0
      %v1112 = vsel %vm1108, 1, 0
      %v1113 = vsel %vm1109, 1, 0
      %v1114 = vsel %vm1110, 1, 0
      %v1115 = vsel %vm1111, 1, 0
      %v1116 = vlaneseq
      %v1117 = vshrl.u32 %v1116, 7
      %v1118 = vsub.s32 0, %v1117
      %v1119 = vrot.slane %v1112, %v1118
      %v1120 = vlaneseq
      %v1121 = vshrl.u32 %v1120, 7
      %v1122 = vsub.s32 0, %v1121
      %v1123 = vrot.slane %v1113, %v1122
      %v1124 = vlaneseq
      %v1125 = vshrl.u32 %v1124, 7
      %v1126 = vsub.s32 0, %v1125
      %v1127 = vrot.slane %v1114, %v1126
      %v1128 = vlaneseq
      %v1129 = vshrl.u32 %v1128, 7
      %v1130 = vsub.s32 0, %v1129
      %v1131 = vrot.slane %v1115, %v1130
      %vm1132 = vcmp.eq.s32.totalorder %v1119, 1
      %vm1133 = vcmp.eq.s32.totalorder %v1123, 1
      %vm1134 = vcmp.eq.s32.totalorder %v1127, 1
      %vm1135 = vcmp.eq.s32.totalorder %v1131, 1
      %v1136 = vsel %vm1132, -1e+09, %v1106
      %v1137 = vsel %vm1132, -1e+09, %v1107
      %v1138 = vsel %vm1133, -1e+09, %v1106
      %v1139 = vsel %vm1133, -1e+09, %v1107
      %v1140 = vsel %vm1134, -1e+09, %v1106
      %v1141 = vsel %vm1134, -1e+09, %v1107
      %v1142 = vsel %vm1135, -1e+09, %v1106
      %v1143 = vsel %vm1135, -1e+09, %v1107
      %vm1144 = vcmask 64512
      %v1145 = vsel %vm1144, %v1136, -inf
      %1146 = vmax.xlane.f32.xlu0 %v1145
      %v1147 = vpop.xlane.xlu0 %1146
      %v1148 = vsel %vm1144, %v1137, -inf
      %1149 = vmax.xlane.f32.xlu0 %v1148
      %v1150 = vpop.xlane.xlu0 %1149
      %v1151 = vsel %vm1144, %v1138, -inf
      %1152 = vmax.xlane.f32.xlu0 %v1151
      %v1153 = vpop.xlane.xlu0 %1152
      %v1154 = vsel %vm1144, %v1139, -inf
      %1155 = vmax.xlane.f32.xlu0 %v1154
      %v1156 = vpop.xlane.xlu0 %1155
      %v1157 = vsel %vm1144, %v1140, -inf
      %1158 = vmax.xlane.f32.xlu0 %v1157
      %v1159 = vpop.xlane.xlu0 %1158
      %v1160 = vsel %vm1144, %v1141, -inf
      %1161 = vmax.xlane.f32.xlu0 %v1160
      %v1162 = vpop.xlane.xlu0 %1161
      %v1163 = vsel %vm1144, %v1142, -inf
      %1164 = vmax.xlane.f32.xlu0 %v1163
      %v1165 = vpop.xlane.xlu0 %1164
      %v1166 = vsel %vm1144, %v1143, -inf
      %1167 = vmax.xlane.f32.xlu0 %v1166
      %v1168 = vpop.xlane.xlu0 %1167
      %v1169 = vsub.f32 %v1136, %v1147
      %v1170 = vsub.f32 %v1137, %v1150
      %v1171 = vsub.f32 %v1138, %v1153
      %v1172 = vsub.f32 %v1139, %v1156
      %v1173 = vsub.f32 %v1140, %v1159
      %v1174 = vsub.f32 %v1141, %v1162
      %v1175 = vsub.f32 %v1142, %v1165
      %v1176 = vsub.f32 %v1143, %v1168
      %v1177 = vmul.f32 %v1169, 1.442695
      %v1178 = vpow.pop %v1177
      %v1179 = vmul.f32 %v1170, 1.442695
      %v1180 = vpow.pop %v1179
      %v1181 = vmul.f32 %v1171, 1.442695
      %v1182 = vpow.pop %v1181
      %v1183 = vmul.f32 %v1172, 1.442695
      %v1184 = vpow.pop %v1183
      %v1185 = vmul.f32 %v1173, 1.442695
      %v1186 = vpow.pop %v1185
      %v1187 = vmul.f32 %v1174, 1.442695
      %v1188 = vpow.pop %v1187
      %v1189 = vmul.f32 %v1175, 1.442695
      %v1190 = vpow.pop %v1189
      %v1191 = vmul.f32 %v1176, 1.442695
      %v1192 = vpow.pop %v1191
      %v1193 = vsel %vm1144, %v1178, 0.0
      %1194 = vadd.xlane.f32.xlu0 %v1193
      %v1195 = vpop.xlane.xlu0 %1194
      %v1196 = vsel %vm1144, %v1180, 0.0
      %1197 = vadd.xlane.f32.xlu0 %v1196
      %v1198 = vpop.xlane.xlu0 %1197
      %v1199 = vsel %vm1144, %v1182, 0.0
      %1200 = vadd.xlane.f32.xlu0 %v1199
      %v1201 = vpop.xlane.xlu0 %1200
      %v1202 = vsel %vm1144, %v1184, 0.0
      %1203 = vadd.xlane.f32.xlu0 %v1202
      %v1204 = vpop.xlane.xlu0 %1203
      %v1205 = vsel %vm1144, %v1186, 0.0
      %1206 = vadd.xlane.f32.xlu0 %v1205
      %v1207 = vpop.xlane.xlu0 %1206
      %v1208 = vsel %vm1144, %v1188, 0.0
      %1209 = vadd.xlane.f32.xlu0 %v1208
      %v1210 = vpop.xlane.xlu0 %1209
      %v1211 = vsel %vm1144, %v1190, 0.0
      %1212 = vadd.xlane.f32.xlu0 %v1211
      %v1213 = vpop.xlane.xlu0 %1212
      %v1214 = vsel %vm1144, %v1192, 0.0
      %1215 = vadd.xlane.f32.xlu0 %v1214
      %v1216 = vpop.xlane.xlu0 %1215
      %v1217 = vrcp.pop %v1195
      %v1218 = vmul.f32 %v1178, %v1217
      %v1219 = vrcp.pop %v1198
      %v1220 = vmul.f32 %v1180, %v1219
      %v1221 = vrcp.pop %v1201
      %v1222 = vmul.f32 %v1182, %v1221
      %v1223 = vrcp.pop %v1204
      %v1224 = vmul.f32 %v1184, %v1223
      %v1225 = vrcp.pop %v1207
      %v1226 = vmul.f32 %v1186, %v1225
      %v1227 = vrcp.pop %v1210
      %v1228 = vmul.f32 %v1188, %v1227
      %v1229 = vrcp.pop %v1213
      %v1230 = vmul.f32 %v1190, %v1229
      %v1231 = vrcp.pop %v1216
      %v1232 = vmul.f32 %v1192, %v1231
      %v1237 = vlaneseq
      %v1238 = vshrl.u32 %v1237, 7
      %v1239 = vsub.s32 0, %v1238
      %v1240 = vrot.slane %v1014, %v1239
      %v1241 = vlaneseq
      %v1242 = vshrl.u32 %v1241, 7
      %v1243 = vsub.s32 0, %v1242
      %v1244 = vrot.slane %v1015, %v1243
      %v1245 = vlaneseq
      %v1246 = vshrl.u32 %v1245, 7
      %v1247 = vsub.s32 0, %v1246
      %v1248 = vrot.slane %v1016, %v1247
      %v1249 = vlaneseq
      %v1250 = vshrl.u32 %v1249, 7
      %v1251 = vsub.s32 0, %v1250
      %v1252 = vrot.slane %v1017, %v1251
      %v1257 = vmul.f32 %v1218, %v1240
      %v1258 = vmul.f32 %v1220, %v1240
      %v1259 = vmul.f32 %v1222, %v1244
      %v1260 = vmul.f32 %v1224, %v1244
      %v1261 = vmul.f32 %v1226, %v1248
      %v1262 = vmul.f32 %v1228, %v1248
      %v1263 = vmul.f32 %v1230, %v1252
      %v1264 = vmul.f32 %v1232, %v1252
      %v1265 = vsel %vm1144, %v1257, 0.0
      %1266 = vadd.xlane.f32.xlu0 %v1265
      %v1267 = vpop.xlane.xlu0 %1266
      %v1268 = vsel %vm1144, %v1258, 0.0
      %1269 = vadd.xlane.f32.xlu0 %v1268
      %v1270 = vpop.xlane.xlu0 %1269
      %v1271 = vsel %vm1144, %v1259, 0.0
      %1272 = vadd.xlane.f32.xlu0 %v1271
      %v1273 = vpop.xlane.xlu0 %1272
      %v1274 = vsel %vm1144, %v1260, 0.0
      %1275 = vadd.xlane.f32.xlu0 %v1274
      %v1276 = vpop.xlane.xlu0 %1275
      %v1277 = vsel %vm1144, %v1261, 0.0
      %1278 = vadd.xlane.f32.xlu0 %v1277
      %v1279 = vpop.xlane.xlu0 %1278
      %v1280 = vsel %vm1144, %v1262, 0.0
      %1281 = vadd.xlane.f32.xlu0 %v1280
      %v1282 = vpop.xlane.xlu0 %1281
      %v1283 = vsel %vm1144, %v1263, 0.0
      %1284 = vadd.xlane.f32.xlu0 %v1283
      %v1285 = vpop.xlane.xlu0 %1284
      %v1286 = vsel %vm1144, %v1264, 0.0
      %1287 = vadd.xlane.f32.xlu0 %v1286
      %v1288 = vpop.xlane.xlu0 %1287
      %v1289 = vld [vmem:[%s10] sm:$0xff]
      %v1290 = vld [vmem:[%s10 + $0x8] sm:$0xff]
      %v1291 = vld [vmem:[%s10 + $0x10] sm:$0xff]
      %v1292 = vld [vmem:[%s10 + $0x18] sm:$0xff]
      %v1293 = vld [vmem:[%s10 + $0x20] sm:$0xff]
      %v1294 = vld [vmem:[%s10 + $0x28] sm:$0xff]
      %v1295 = vld [vmem:[%s10 + $0x30] sm:$0xff]
      %v1296 = vld [vmem:[%s10 + $0x38] sm:$0xff]
      %v1297 = vld [vmem:[%s10 + $0x40] sm:$0xff]
      %v1298 = vld [vmem:[%s10 + $0x48] sm:$0xff]
      %v1299 = vld [vmem:[%s10 + $0x50] sm:$0xff]
      %v1300 = vld [vmem:[%s10 + $0x58] sm:$0xff]
      %v1301 = vld [vmem:[%s11] sm:$0xff]
      %v1302 = vld [vmem:[%s11 + $0x8] sm:$0xff]
      %v1303 = vld [vmem:[%s11 + $0x10] sm:$0xff]
      %v1304 = vld [vmem:[%s11 + $0x18] sm:$0xff]
      %v1305 = vld [vmem:[%s11 + $0x20] sm:$0xff]
      %v1306 = vld [vmem:[%s11 + $0x28] sm:$0xff]
      %v1307 = vld [vmem:[%s11 + $0x30] sm:$0xff]
      %v1308 = vld [vmem:[%s11 + $0x38] sm:$0xff]
      %v1309 = vld [vmem:[%s11 + $0x40] sm:$0xff]
      %v1310 = vld [vmem:[%s11 + $0x48] sm:$0xff]
      %v1311 = vld [vmem:[%s11 + $0x50] sm:$0xff]
      %v1312 = vld [vmem:[%s11 + $0x58] sm:$0xff]
      %1314 = vset.pattern.permute.xlu0 0
      %1315 = vperm.xlu0 %1314, %v1301
      %v1316 = vpop.permute.xlu0 %1315
      %1319 = vset.pattern.permute.xlu0 0
      %1320 = vperm.xlu0 %1319, %v1302
      %v1321 = vpop.permute.xlu0 %1320
      %1324 = vset.pattern.permute.xlu0 0
      %1325 = vperm.xlu0 %1324, %v1303
      %v1326 = vpop.permute.xlu0 %1325
      %1329 = vset.pattern.permute.xlu0 0
      %1330 = vperm.xlu0 %1329, %v1304
      %v1331 = vpop.permute.xlu0 %1330
      %1334 = vset.pattern.permute.xlu0 0
      %1335 = vperm.xlu0 %1334, %v1305
      %v1336 = vpop.permute.xlu0 %1335
      %1339 = vset.pattern.permute.xlu0 0
      %1340 = vperm.xlu0 %1339, %v1306
      %v1341 = vpop.permute.xlu0 %1340
      %1344 = vset.pattern.permute.xlu0 0
      %1345 = vperm.xlu0 %1344, %v1307
      %v1346 = vpop.permute.xlu0 %1345
      %1349 = vset.pattern.permute.xlu0 0
      %1350 = vperm.xlu0 %1349, %v1308
      %v1351 = vpop.permute.xlu0 %1350
      %1354 = vset.pattern.permute.xlu0 0
      %1355 = vperm.xlu0 %1354, %v1309
      %v1356 = vpop.permute.xlu0 %1355
      %1359 = vset.pattern.permute.xlu0 0
      %1360 = vperm.xlu0 %1359, %v1310
      %v1361 = vpop.permute.xlu0 %1360
      %1364 = vset.pattern.permute.xlu0 0
      %1365 = vperm.xlu0 %1364, %v1311
      %v1366 = vpop.permute.xlu0 %1365
      %1369 = vset.pattern.permute.xlu0 0
      %1370 = vperm.xlu0 %1369, %v1312
      %v1371 = vpop.permute.xlu0 %1370
      %v1381 = vlaneseq
      %v1382 = vshrl.u32 %v1381, 7
      %v1383 = vsub.s32 %v510, %v1382
      %v1384 = vrot.slane %v1267, %v1383
      %v1385 = vadd.s32 %v510, 4294967288
      %v1386 = vlaneseq
      %v1387 = vshrl.u32 %v1386, 7
      %v1388 = vsub.s32 %v1385, %v1387
      %v1389 = vrot.slane %v1270, %v1388
      %vm1390 = vcmask 130112
      %v1391 = vsel %vm1390, %v1389, %v1384
      %v1392 = vlaneseq
      %v1393 = vshrl.u32 %v1392, 7
      %v1394 = vsub.s32 %v510, %v1393
      %v1395 = vrot.slane %v1273, %v1394
      %v1396 = vlaneseq
      %v1397 = vshrl.u32 %v1396, 7
      %v1398 = vsub.s32 %v1385, %v1397
      %v1399 = vrot.slane %v1276, %v1398
      %v1400 = vsel %vm1390, %v1399, %v1395
      %v1401 = vlaneseq
      %v1402 = vshrl.u32 %v1401, 7
      %v1403 = vsub.s32 %v510, %v1402
      %v1404 = vrot.slane %v1279, %v1403
      %v1405 = vlaneseq
      %v1406 = vshrl.u32 %v1405, 7
      %v1407 = vsub.s32 %v1385, %v1406
      %v1408 = vrot.slane %v1282, %v1407
      %v1409 = vsel %vm1390, %v1408, %v1404
      %v1410 = vlaneseq
      %v1411 = vshrl.u32 %v1410, 7
      %v1412 = vsub.s32 %v510, %v1411
      %v1413 = vrot.slane %v1285, %v1412
      %v1414 = vlaneseq
      %v1415 = vshrl.u32 %v1414, 7
      %v1416 = vsub.s32 %v1385, %v1415
      %v1417 = vrot.slane %v1288, %v1416
      %v1418 = vsel %vm1390, %v1417, %v1413
      %vm1419 = vcmask 1041409
      %v1420 = vsel %vm1419, %v1400, %v1391
      %vm1421 = vcmask 1042434
      %v1422 = vsel %vm1421, %v1409, %v1420
      %vm1423 = vcmask 1043459
      %v1424 = vsel %vm1423, %v1418, %v1422
      %vm1425 = vcmask 31744
      %v1427 = vsel %vm1425, %v1289, 0
      %v1430 = vsel %vm1425, %v1290, 0
      %v1433 = vsel %vm1425, %v1291, 0
      %v1436 = vsel %vm1425, %v1292, 0
      %v1439 = vsel %vm1425, %v1293, 0
      %v1442 = vsel %vm1425, %v1294, 0
      %v1445 = vsel %vm1425, %v1295, 0
      %v1448 = vsel %vm1425, %v1296, 0
      %v1451 = vsel %vm1425, %v1297, 0
      %v1454 = vsel %vm1425, %v1298, 0
      %v1457 = vsel %vm1425, %v1299, 0
      %v1460 = vsel %vm1425, %v1300, 0
      %vm1462 = vcmask 1043456
      %v1463 = vsel %vm1462, %v1424, 0
      %1465 = vmatprep.subr.mxu0 0.0
      %1466 = vmatpush1.msra.mxu0 %v1463
      %1467 = vmatprep.subr.mxu0 0.0
      %1468 = vmatpush1.msra.mxu0 0.0
      %1469 = vmatprep.subr.mxu0 0.0
      %1470 = vmatpush1.msra.mxu0 0.0
      %1471 = vmatprep.subr.mxu0 0.0
      %1472 = vmatpush1.msra.mxu0 0.0
      %1473 = vmatprep.subr.mxu0 0.0
      %1474 = vmatpush1.msra.mxu0 0.0
      %1475 = vmatprep.subr.mxu0 0.0
      %1476 = vmatpush1.msra.mxu0 0.0
      %1477 = vmatprep.subr.mxu0 0.0
      %1478 = vmatpush1.msra.mxu0 0.0
      %1479 = vmatprep.subr.mxu0 0.0
      %1480 = vmatpush1.msra.mxu0 0.0
      %1481 = vmatprep.subr.mxu0 0.0
      %1482 = vmatpush1.msra.mxu0 0.0
      %1483 = vmatprep.subr.mxu0 0.0
      %1484 = vmatpush1.msra.mxu0 0.0
      %1485 = vmatprep.subr.mxu0 0.0
      %1486 = vmatpush1.msra.mxu0 0.0
      %1487 = vmatprep.subr.mxu0 0.0
      %1488 = vmatpush1.msra.mxu0 0.0
      %1489 = vmatprep.subr.mxu0 0.0
      %1490 = vmatpush1.msra.mxu0 0.0
      %1491 = vmatprep.subr.mxu0 0.0
      %1492 = vmatpush1.msra.mxu0 0.0
      %1493 = vmatprep.subr.mxu0 0.0
      %1494 = vmatpush1.msra.mxu0 0.0
      %1495 = vmatprep.subr.mxu0 0.0
      %1496 = vmatpush1.msra.mxu0 0.0
      %1497 = vmatprep.subr.mxu0 0.0
      %1498 = vmatpush1.msra.mxu0 0.0
      %1499 = vmatprep.subr.mxu0 0.0
      %1500 = vmatpush1.msra.mxu0 0.0
      %1501 = vmatprep.subr.mxu0 0.0
      %1502 = vmatpush1.msra.mxu0 0.0
      %1503 = vmatprep.subr.mxu0 0.0
      %1504 = vmatpush1.msra.mxu0 0.0
      %1505 = vmatprep.subr.mxu0 0.0
      %1506 = vmatpush1.msra.mxu0 0.0
      %1507 = vmatprep.subr.mxu0 0.0
      %1508 = vmatpush1.msra.mxu0 0.0
      %1509 = vmatprep.subr.mxu0 0.0
      %1510 = vmatpush1.msra.mxu0 0.0
      %1511 = vmatprep.subr.mxu0 0.0
      %1512 = vmatpush1.msra.mxu0 0.0
      %1513 = vmatprep.subr.mxu0 0.0
      %1514 = vmatpush1.msra.mxu0 0.0
      %1515 = vmatprep.subr.mxu0 0.0
      %1516 = vmatpush1.msra.mxu0 0.0
      %1517 = vmatprep.subr.mxu0 0.0
      %1518 = vmatpush1.msra.mxu0 0.0
      %1519 = vmatprep.subr.mxu0 0.0
      %1520 = vmatpush1.msra.mxu0 0.0
      %1521 = vmatprep.subr.mxu0 0.0
      %1522 = vmatpush1.msra.mxu0 0.0
      %1523 = vmatprep.subr.mxu0 0.0
      %1524 = vmatpush1.msra.mxu0 0.0
      %1525 = vmatprep.subr.mxu0 0.0
      %1526 = vmatpush1.msra.mxu0 0.0
      %1527 = vmatprep.subr.mxu0 0.0
      %1528 = vmatpush1.msra.mxu0 0.0
      %1529 = vmatprep.mubr.f32.mxu0 0.0
      %1530 = vmatmul.mubr.f32.gmra.mrb[0].mxu0 %v1427
      %v1531 = vpop.f32.mrb[0].mxu0
      %v1532 = vadd.f32 %v1316, %v1531
      %v1533 = vpop.f32.mrb[0].mxu0
      %1534 = vmatprep.mubr.f32.mxu0 0.0
      %1535 = vmatmul.mubr.f32.gmra.mrb[0].mxu0 %v1430
      %v1536 = vpop.f32.mrb[0].mxu0
      %v1537 = vadd.f32 %v1321, %v1536
      %v1538 = vpop.f32.mrb[0].mxu0
      %1539 = vmatprep.mubr.f32.mxu0 0.0
      %1540 = vmatmul.mubr.f32.gmra.mrb[0].mxu0 %v1433
      %v1541 = vpop.f32.mrb[0].mxu0
      %v1542 = vadd.f32 %v1326, %v1541
      %v1543 = vpop.f32.mrb[0].mxu0
      %1544 = vmatprep.mubr.f32.mxu0 0.0
      %1545 = vmatmul.mubr.f32.gmra.mrb[0].mxu0 %v1436
      %v1546 = vpop.f32.mrb[0].mxu0
      %v1547 = vadd.f32 %v1331, %v1546
      %v1548 = vpop.f32.mrb[0].mxu0
      %1549 = vmatprep.mubr.f32.mxu0 0.0
      %1550 = vmatmul.mubr.f32.gmra.mrb[0].mxu0 %v1439
      %v1551 = vpop.f32.mrb[0].mxu0
      %v1552 = vadd.f32 %v1336, %v1551
      %v1553 = vpop.f32.mrb[0].mxu0
      %1554 = vmatprep.mubr.f32.mxu0 0.0
      %1555 = vmatmul.mubr.f32.gmra.mrb[0].mxu0 %v1442
      %v1556 = vpop.f32.mrb[0].mxu0
      %v1557 = vadd.f32 %v1341, %v1556
      %v1558 = vpop.f32.mrb[0].mxu0
      %1559 = vmatprep.mubr.f32.mxu0 0.0
      %1560 = vmatmul.mubr.f32.gmra.mrb[0].mxu0 %v1445
      %v1561 = vpop.f32.mrb[0].mxu0
      %v1562 = vadd.f32 %v1346, %v1561
      %v1563 = vpop.f32.mrb[0].mxu0
      %1564 = vmatprep.mubr.f32.mxu0 0.0
      %1565 = vmatmul.mubr.f32.gmra.mrb[0].mxu0 %v1448
      %v1566 = vpop.f32.mrb[0].mxu0
      %v1567 = vadd.f32 %v1351, %v1566
      %v1568 = vpop.f32.mrb[0].mxu0
      %1569 = vmatprep.mubr.f32.mxu0 0.0
      %1570 = vmatmul.mubr.f32.gmra.mrb[0].mxu0 %v1451
      %v1571 = vpop.f32.mrb[0].mxu0
      %v1572 = vadd.f32 %v1356, %v1571
      %v1573 = vpop.f32.mrb[0].mxu0
      %1574 = vmatprep.mubr.f32.mxu0 0.0
      %1575 = vmatmul.mubr.f32.gmra.mrb[0].mxu0 %v1454
      %v1576 = vpop.f32.mrb[0].mxu0
      %v1577 = vadd.f32 %v1361, %v1576
      %v1578 = vpop.f32.mrb[0].mxu0
      %1579 = vmatprep.mubr.f32.mxu0 0.0
      %1580 = vmatmul.mubr.f32.gmra.mrb[0].mxu0 %v1457
      %v1581 = vpop.f32.mrb[0].mxu0
      %v1582 = vadd.f32 %v1366, %v1581
      %v1583 = vpop.f32.mrb[0].mxu0
      %1584 = vmatprep.mubr.f32.mxu0 0.0
      %1585 = vmatmul.mubr.f32.gmra.mrb[0].mxu0 %v1460
      %v1586 = vpop.f32.mrb[0].mxu0
      %v1587 = vadd.f32 %v1371, %v1586
      %v1588 = vpop.f32.mrb[0].mxu0
      %1589 = vdwg.mxu0
      %1590 = vst.msk [vmem:[%s479] sm:$0xff] %vm850, %v1532
      %1591 = vst.msk [vmem:[%s479 + $0x8] sm:$0xff] %vm850, %v1537
      %1592 = vst.msk [vmem:[%s479 + $0x10] sm:$0xff] %vm850, %v1542
      %1593 = vst.msk [vmem:[%s479 + $0x18] sm:$0xff] %vm850, %v1547
      %1594 = vst.msk [vmem:[%s479 + $0x20] sm:$0xff] %vm850, %v1552
      %1595 = vst.msk [vmem:[%s479 + $0x28] sm:$0xff] %vm850, %v1557
      %1596 = vst.msk [vmem:[%s479 + $0x30] sm:$0xff] %vm850, %v1562
      %1597 = vst.msk [vmem:[%s479 + $0x38] sm:$0xff] %vm850, %v1567
      %1598 = vst.msk [vmem:[%s479 + $0x40] sm:$0xff] %vm850, %v1572
      %1599 = vst.msk [vmem:[%s479 + $0x48] sm:$0xff] %vm850, %v1577
      %1600 = vst.msk [vmem:[%s479 + $0x50] sm:$0xff] %vm850, %v1582
      %1601 = vst.msk [vmem:[%s479 + $0x58] sm:$0xff] %vm850, %v1587
      %s1602 = scalar_lea.vmem %s10, 96
      %v1603 = vld [vmem:[%s1602] sm:$0xff]
      %v1604 = vld [vmem:[%s1602 + $0x8] sm:$0xff]
      %v1605 = vld [vmem:[%s1602 + $0x10] sm:$0xff]
      %v1606 = vld [vmem:[%s1602 + $0x18] sm:$0xff]
      %v1607 = vld [vmem:[%s1602 + $0x20] sm:$0xff]
      %v1608 = vld [vmem:[%s1602 + $0x28] sm:$0xff]
      %v1609 = vld [vmem:[%s1602 + $0x30] sm:$0xff]
      %v1610 = vld [vmem:[%s1602 + $0x38] sm:$0xff]
      %v1611 = vld [vmem:[%s1602 + $0x40] sm:$0xff]
      %v1612 = vld [vmem:[%s1602 + $0x48] sm:$0xff]
      %v1613 = vld [vmem:[%s1602 + $0x50] sm:$0xff]
      %v1614 = vld [vmem:[%s1602 + $0x58] sm:$0xff]
      %s1615 = scalar_lea.vmem %s11, 96
      %v1616 = vld [vmem:[%s1615] sm:$0xff]
      %v1617 = vld [vmem:[%s1615 + $0x8] sm:$0xff]
      %v1618 = vld [vmem:[%s1615 + $0x10] sm:$0xff]
      %v1619 = vld [vmem:[%s1615 + $0x18] sm:$0xff]
      %v1620 = vld [vmem:[%s1615 + $0x20] sm:$0xff]
      %v1621 = vld [vmem:[%s1615 + $0x28] sm:$0xff]
      %v1622 = vld [vmem:[%s1615 + $0x30] sm:$0xff]
      %v1623 = vld [vmem:[%s1615 + $0x38] sm:$0xff]
      %v1624 = vld [vmem:[%s1615 + $0x40] sm:$0xff]
      %v1625 = vld [vmem:[%s1615 + $0x48] sm:$0xff]
      %v1626 = vld [vmem:[%s1615 + $0x50] sm:$0xff]
      %v1627 = vld [vmem:[%s1615 + $0x58] sm:$0xff]
      %1629 = vset.pattern.permute.xlu0 0
      %1630 = vperm.xlu0 %1629, %v1616
      %v1631 = vpop.permute.xlu0 %1630
      %1634 = vset.pattern.permute.xlu0 0
      %1635 = vperm.xlu0 %1634, %v1617
      %v1636 = vpop.permute.xlu0 %1635
      %1639 = vset.pattern.permute.xlu0 0
      %1640 = vperm.xlu0 %1639, %v1618
      %v1641 = vpop.permute.xlu0 %1640
      %1644 = vset.pattern.permute.xlu0 0
      %1645 = vperm.xlu0 %1644, %v1619
      %v1646 = vpop.permute.xlu0 %1645
      %1649 = vset.pattern.permute.xlu0 0
      %1650 = vperm.xlu0 %1649, %v1620
      %v1651 = vpop.permute.xlu0 %1650
      %1654 = vset.pattern.permute.xlu0 0
      %1655 = vperm.xlu0 %1654, %v1621
      %v1656 = vpop.permute.xlu0 %1655
      %1659 = vset.pattern.permute.xlu0 0
      %1660 = vperm.xlu0 %1659, %v1622
      %v1661 = vpop.permute.xlu0 %1660
      %1664 = vset.pattern.permute.xlu0 0
      %1665 = vperm.xlu0 %1664, %v1623
      %v1666 = vpop.permute.xlu0 %1665
      %1669 = vset.pattern.permute.xlu0 0
      %1670 = vperm.xlu0 %1669, %v1624
      %v1671 = vpop.permute.xlu0 %1670
      %1674 = vset.pattern.permute.xlu0 0
      %1675 = vperm.xlu0 %1674, %v1625
      %v1676 = vpop.permute.xlu0 %1675
      %1679 = vset.pattern.permute.xlu0 0
      %1680 = vperm.xlu0 %1679, %v1626
      %v1681 = vpop.permute.xlu0 %1680
      %1684 = vset.pattern.permute.xlu0 0
      %1685 = vperm.xlu0 %1684, %v1627
      %v1686 = vpop.permute.xlu0 %1685
      %v1689 = vsel %vm1425, %v1603, 0
      %v1692 = vsel %vm1425, %v1604, 0
      %v1695 = vsel %vm1425, %v1605, 0
      %v1698 = vsel %vm1425, %v1606, 0
      %v1701 = vsel %vm1425, %v1607, 0
      %v1704 = vsel %vm1425, %v1608, 0
      %v1707 = vsel %vm1425, %v1609, 0
      %v1710 = vsel %vm1425, %v1610, 0
      %v1713 = vsel %vm1425, %v1611, 0
      %v1716 = vsel %vm1425, %v1612, 0
      %v1719 = vsel %vm1425, %v1613, 0
      %v1722 = vsel %vm1425, %v1614, 0
      %1724 = vmatprep.subr.mxu0 0.0
      %1725 = vmatpush1.msra.mxu0 %v1463
      %1726 = vmatprep.subr.mxu0 0.0
      %1727 = vmatpush1.msra.mxu0 0.0
      %1728 = vmatprep.subr.mxu0 0.0
      %1729 = vmatpush1.msra.mxu0 0.0
      %1730 = vmatprep.subr.mxu0 0.0
      %1731 = vmatpush1.msra.mxu0 0.0
      %1732 = vmatprep.subr.mxu0 0.0
      %1733 = vmatpush1.msra.mxu0 0.0
      %1734 = vmatprep.subr.mxu0 0.0
      %1735 = vmatpush1.msra.mxu0 0.0
      %1736 = vmatprep.subr.mxu0 0.0
      %1737 = vmatpush1.msra.mxu0 0.0
      %1738 = vmatprep.subr.mxu0 0.0
      %1739 = vmatpush1.msra.mxu0 0.0
      %1740 = vmatprep.subr.mxu0 0.0
      %1741 = vmatpush1.msra.mxu0 0.0
      %1742 = vmatprep.subr.mxu0 0.0
      %1743 = vmatpush1.msra.mxu0 0.0
      %1744 = vmatprep.subr.mxu0 0.0
      %1745 = vmatpush1.msra.mxu0 0.0
      %1746 = vmatprep.subr.mxu0 0.0
      %1747 = vmatpush1.msra.mxu0 0.0
      %1748 = vmatprep.subr.mxu0 0.0
      %1749 = vmatpush1.msra.mxu0 0.0
      %1750 = vmatprep.subr.mxu0 0.0
      %1751 = vmatpush1.msra.mxu0 0.0
      %1752 = vmatprep.subr.mxu0 0.0
      %1753 = vmatpush1.msra.mxu0 0.0
      %1754 = vmatprep.subr.mxu0 0.0
      %1755 = vmatpush1.msra.mxu0 0.0
      %1756 = vmatprep.subr.mxu0 0.0
      %1757 = vmatpush1.msra.mxu0 0.0
      %1758 = vmatprep.subr.mxu0 0.0
      %1759 = vmatpush1.msra.mxu0 0.0
      %1760 = vmatprep.subr.mxu0 0.0
      %1761 = vmatpush1.msra.mxu0 0.0
      %1762 = vmatprep.subr.mxu0 0.0
      %1763 = vmatpush1.msra.mxu0 0.0
      %1764 = vmatprep.subr.mxu0 0.0
      %1765 = vmatpush1.msra.mxu0 0.0
      %1766 = vmatprep.subr.mxu0 0.0
      %1767 = vmatpush1.msra.mxu0 0.0
      %1768 = vmatprep.subr.mxu0 0.0
      %1769 = vmatpush1.msra.mxu0 0.0
      %1770 = vmatprep.subr.mxu0 0.0
      %1771 = vmatpush1.msra.mxu0 0.0
      %1772 = vmatprep.subr.mxu0 0.0
      %1773 = vmatpush1.msra.mxu0 0.0
      %1774 = vmatprep.subr.mxu0 0.0
      %1775 = vmatpush1.msra.mxu0 0.0
      %1776 = vmatprep.subr.mxu0 0.0
      %1777 = vmatpush1.msra.mxu0 0.0
      %1778 = vmatprep.subr.mxu0 0.0
      %1779 = vmatpush1.msra.mxu0 0.0
      %1780 = vmatprep.subr.mxu0 0.0
      %1781 = vmatpush1.msra.mxu0 0.0
      %1782 = vmatprep.subr.mxu0 0.0
      %1783 = vmatpush1.msra.mxu0 0.0
      %1784 = vmatprep.subr.mxu0 0.0
      %1785 = vmatpush1.msra.mxu0 0.0
      %1786 = vmatprep.subr.mxu0 0.0
      %1787 = vmatpush1.msra.mxu0 0.0
      %1788 = vmatprep.mubr.f32.mxu0 0.0
      %1789 = vmatmul.mubr.f32.gmra.mrb[0].mxu0 %v1689
      %v1790 = vpop.f32.mrb[0].mxu0
      %v1791 = vadd.f32 %v1631, %v1790
      %v1792 = vpop.f32.mrb[0].mxu0
      %1793 = vmatprep.mubr.f32.mxu0 0.0
      %1794 = vmatmul.mubr.f32.gmra.mrb[0].mxu0 %v1692
      %v1795 = vpop.f32.mrb[0].mxu0
      %v1796 = vadd.f32 %v1636, %v1795
      %v1797 = vpop.f32.mrb[0].mxu0
      %1798 = vmatprep.mubr.f32.mxu0 0.0
      %1799 = vmatmul.mubr.f32.gmra.mrb[0].mxu0 %v1695
      %v1800 = vpop.f32.mrb[0].mxu0
      %v1801 = vadd.f32 %v1641, %v1800
      %v1802 = vpop.f32.mrb[0].mxu0
      %1803 = vmatprep.mubr.f32.mxu0 0.0
      %1804 = vmatmul.mubr.f32.gmra.mrb[0].mxu0 %v1698
      %v1805 = vpop.f32.mrb[0].mxu0
      %v1806 = vadd.f32 %v1646, %v1805
      %v1807 = vpop.f32.mrb[0].mxu0
      %1808 = vmatprep.mubr.f32.mxu0 0.0
      %1809 = vmatmul.mubr.f32.gmra.mrb[0].mxu0 %v1701
      %v1810 = vpop.f32.mrb[0].mxu0
      %v1811 = vadd.f32 %v1651, %v1810
      %v1812 = vpop.f32.mrb[0].mxu0
      %1813 = vmatprep.mubr.f32.mxu0 0.0
      %1814 = vmatmul.mubr.f32.gmra.mrb[0].mxu0 %v1704
      %v1815 = vpop.f32.mrb[0].mxu0
      %v1816 = vadd.f32 %v1656, %v1815
      %v1817 = vpop.f32.mrb[0].mxu0
      %1818 = vmatprep.mubr.f32.mxu0 0.0
      %1819 = vmatmul.mubr.f32.gmra.mrb[0].mxu0 %v1707
      %v1820 = vpop.f32.mrb[0].mxu0
      %v1821 = vadd.f32 %v1661, %v1820
      %v1822 = vpop.f32.mrb[0].mxu0
      %1823 = vmatprep.mubr.f32.mxu0 0.0
      %1824 = vmatmul.mubr.f32.gmra.mrb[0].mxu0 %v1710
      %v1825 = vpop.f32.mrb[0].mxu0
      %v1826 = vadd.f32 %v1666, %v1825
      %v1827 = vpop.f32.mrb[0].mxu0
      %1828 = vmatprep.mubr.f32.mxu0 0.0
      %1829 = vmatmul.mubr.f32.gmra.mrb[0].mxu0 %v1713
      %v1830 = vpop.f32.mrb[0].mxu0
      %v1831 = vadd.f32 %v1671, %v1830
      %v1832 = vpop.f32.mrb[0].mxu0
      %1833 = vmatprep.mubr.f32.mxu0 0.0
      %1834 = vmatmul.mubr.f32.gmra.mrb[0].mxu0 %v1716
      %v1835 = vpop.f32.mrb[0].mxu0
      %v1836 = vadd.f32 %v1676, %v1835
      %v1837 = vpop.f32.mrb[0].mxu0
      %1838 = vmatprep.mubr.f32.mxu0 0.0
      %1839 = vmatmul.mubr.f32.gmra.mrb[0].mxu0 %v1719
      %v1840 = vpop.f32.mrb[0].mxu0
      %v1841 = vadd.f32 %v1681, %v1840
      %v1842 = vpop.f32.mrb[0].mxu0
      %1843 = vmatprep.mubr.f32.mxu0 0.0
      %1844 = vmatmul.mubr.f32.gmra.mrb[0].mxu0 %v1722
      %v1845 = vpop.f32.mrb[0].mxu0
      %v1846 = vadd.f32 %v1686, %v1845
      %v1847 = vpop.f32.mrb[0].mxu0
      %1848 = vdwg.mxu0
      %1849 = vst.msk [vmem:[%s484] sm:$0xff] %vm850, %v1791
      %1850 = vst.msk [vmem:[%s484 + $0x8] sm:$0xff] %vm850, %v1796
      %1851 = vst.msk [vmem:[%s484 + $0x10] sm:$0xff] %vm850, %v1801
      %1852 = vst.msk [vmem:[%s484 + $0x18] sm:$0xff] %vm850, %v1806
      %1853 = vst.msk [vmem:[%s484 + $0x20] sm:$0xff] %vm850, %v1811
      %1854 = vst.msk [vmem:[%s484 + $0x28] sm:$0xff] %vm850, %v1816
      %1855 = vst.msk [vmem:[%s484 + $0x30] sm:$0xff] %vm850, %v1821
      %1856 = vst.msk [vmem:[%s484 + $0x38] sm:$0xff] %vm850, %v1826
      %1857 = vst.msk [vmem:[%s484 + $0x40] sm:$0xff] %vm850, %v1831
      %1858 = vst.msk [vmem:[%s484 + $0x48] sm:$0xff] %vm850, %v1836
      %1859 = vst.msk [vmem:[%s484 + $0x50] sm:$0xff] %vm850, %v1841
      %1860 = vst.msk [vmem:[%s484 + $0x58] sm:$0xff] %vm850, %v1846
      %p1861 = scmp.lt.s32.totalorder %s25, 1
      %s1862 = scalar_select %p1861, %s25, 1
      %s1863 = smul.addr %s1862, 12
      %s1864 = smul.addr %s1863, 8
      %s1865 = scalar_lea.vmem %s12, %s1864
      %p1866 = scmp.lt.s32.totalorder %s25, 1
      %s1867 = scalar_select %p1866, %s25, 1
      %s1868 = smul.addr %s1867, 12
      %s1869 = smul.addr %s1868, 8
      %s1870 = scalar_lea.vmem %s13, %s1869
      // Predicated region
      $region69: #{enc_mtan_gru_forward.2} parent=67 // pred_check
        %p1871 = pneg %p310
      $region70: #{enc_mtan_gru_forward.2} parent=67 // pred_check_branch
        %1873 = sbr.rel (%p1871) target = $region72
      $region71: #{enc_mtan_gru_forward.2} parent=67 // pred_region
        _
      $region72: #{enc_mtan_gru_forward.2} parent=67 // pred_fallthru
        _
      // Predicated region
      $region73: #{enc_mtan_gru_forward.2} parent=67 // pred_check
        %p1874 = pneg %p336
      $region74: #{enc_mtan_gru_forward.2} parent=67 // pred_check_branch
        %1876 = sbr.rel (%p1874) target = $region76
      $region75: #{enc_mtan_gru_forward.2} parent=67 // pred_region
        _
      $region76: #{enc_mtan_gru_forward.2} parent=67 // pred_fallthru
        _
    $region68: #{enc_mtan_gru_forward.2} parent=5 // pred_fallthru
      _
    %p1877 = scmp.le.s32.totalorder 2, %s20
    // Predicated region
    $region77: #{enc_mtan_gru_forward.2} parent=5 // pred_check
      %p1878 = pneg %p1877
    $region78: #{enc_mtan_gru_forward.2} parent=5 // pred_check_branch
      %1880 = sbr.rel (%p1878) target = $region80
    $region79: #{enc_mtan_gru_forward.2} parent=5 // pred_region
      %s1881 = ssub.s32 %s20, 2
      // Predicated region
      $region81: #{enc_mtan_gru_forward.2} parent=79 // pred_check
        %p1882 = pneg %p316
      $region82: #{enc_mtan_gru_forward.2} parent=79 // pred_check_branch
        %1884 = sbr.rel (%p1882) target = $region84
      $region83: #{enc_mtan_gru_forward.2} parent=79 // pred_region
        %p1885 = scmp.lt.s32.totalorder %s26, 1
        %s1886 = scalar_select %p1885, %s26, 1
        %s1887 = smul.addr %s1886, 12
        %s1888 = smul.addr %s1887, 8
        %s1889 = scalar_lea.vmem %s12, %s1888
      $region84: #{enc_mtan_gru_forward.2} parent=79 // pred_fallthru
        _
      // Predicated region
      $region85: #{enc_mtan_gru_forward.2} parent=79 // pred_check
        %p1890 = pneg %p342
      $region86: #{enc_mtan_gru_forward.2} parent=79 // pred_check_branch
        %1892 = sbr.rel (%p1890) target = $region88
      $region87: #{enc_mtan_gru_forward.2} parent=79 // pred_region
        %p1893 = scmp.lt.s32.totalorder %s26, 1
        %s1894 = scalar_select %p1893, %s26, 1
        %s1895 = smul.addr %s1894, 12
        %s1896 = smul.addr %s1895, 8
        %s1897 = scalar_lea.vmem %s13, %s1896
      $region88: #{enc_mtan_gru_forward.2} parent=79 // pred_fallthru
        _
    $region80: #{enc_mtan_gru_forward.2} parent=5 // pred_fallthru
      _
  $region6: #{enc_mtan_gru_forward.2} parent=0 // loop_footer
    %s24 = sadd.s32 1, %s20
  $region7: #{enc_mtan_gru_forward.2} parent=0 // loop_footer_branch
    %19 = sbr.rel target = $region3
  $region8: #{enc_mtan_gru_forward.2} parent=0 // loop_exit
    _

</llo_original>
